<compile_context>
chip_gen: v7x
topology: tpu7x:2x2x1
jax: 0.10.0
libtpu: 0.0.40
codegen_flags: <defaults>
</compile_context>

<pallas_src>
import functools

import jax
import jax.numpy as jnp
from jax.experimental import pallas as pl
from jax.experimental.pallas import tpu as pltpu


# -----------------------------------------------------------------------------
# Parameter packing (done once in the wrapper, outside the kernel)
# -----------------------------------------------------------------------------
def _prepare_params(weights, biases, param_dtype):
    """Build the per-layer plan and flat parameter list.

    plan[i] = ("fused", din, dout) -> params: [blockdiag(W,|W|) (2din,2dout) bf16, [b|0] (1,2dout) f32]
              ("split", din, dout) -> params: [W (din,dout) bf16, |W| (din,dout) bf16, b (1,dout) f32]
    """
    plan, flat = [], []
    for w, b in zip(weights, biases):
        din, dout = w.shape
        w32 = w.astype(param_dtype).astype(jnp.float32)   # quantize once to the storage dtype
        b32 = jnp.reshape(b, (1, dout)).astype(jnp.float32)
        if 2 * din <= 128 and 2 * dout <= 128:
            rhs = jnp.zeros((2 * din, 2 * dout), jnp.float32)
            rhs = rhs.at[:din, :dout].set(w32)
            rhs = rhs.at[din:, dout:].set(jnp.abs(w32))
            b_packed = jnp.concatenate([b32, jnp.zeros_like(b32)], axis=-1)
            plan.append(("fused", din, dout))
            flat += [rhs.astype(param_dtype), b_packed]
        else:
            plan.append(("split", din, dout))
            flat += [w32.astype(param_dtype), jnp.abs(w32).astype(param_dtype), b32]
    return tuple(plan), flat


def _repack_width(plan):
    """Lane width of the scratch buffer used to re-pack [mu|eps] for fused layers after the first."""
    w = 0
    for li, (mode, din, _) in enumerate(plan):
        if mode == "fused" and li > 0:
            w = max(w, 2 * din)
    return w


def _pick_tile_b(batch):
    for t in (512, 256, 128, 64, 32, 16, 8):
        if batch >= t and batch % t == 0:
            return t
    return batch


# -----------------------------------------------------------------------------
# Pallas kernel factory
# -----------------------------------------------------------------------------
def _make_interval_mlp_kernel(plan, use_softmax):
    n_param_refs = sum(2 if mode == "fused" else 3 for mode, _, _ in plan)
    n_layers = len(plan)
    dim_out = plan[-1][2]
    has_scratch = _repack_width(plan) > 0

    def kernel(*refs):
        x_ref = refs[0]                                  # (TILE_B, 2*dim_in), lane-packed [mu|eps]
        param_refs = refs[1:1 + n_param_refs]
        out_ref = refs[1 + n_param_refs]                 # (TILE_B, 2*dim_out), lane-packed [mu|eps]
        pack_ref = refs[2 + n_param_refs] if has_scratch else None

        packed = x_ref[...].astype(jnp.float32)          # packed representation of the activations
        mu = eps = None                                  # pair representation (filled lazily)

        idx = 0
        for li, (mode, din, dout) in enumerate(plan):
            if mode == "fused":
                rhs = param_refs[idx][...].astype(jnp.float32)     # (2*din, 2*dout) = blockdiag(W,|W|)
                b = param_refs[idx + 1][...].astype(jnp.float32)   # (1, 2*dout) = [b | 0]
                idx += 2
                if packed is None:
                    # re-pack [mu | eps] through a VMEM scratch (sliced stores + one sliced load)
                    pack_ref[:, :din] = mu
                    pack_ref[:, din:2 * din] = eps
                    packed = pack_ref[:, :2 * din]
                out = jnp.dot(packed, rhs, preferred_element_type=jnp.float32) + b
                mu, eps = out[:, :dout], out[:, dout:]
            else:
                w = param_refs[idx][...].astype(jnp.float32)       # (din, dout)
                wabs = param_refs[idx + 1][...].astype(jnp.float32)
                b = param_refs[idx + 2][...].astype(jnp.float32)   # (1, dout)
                idx += 3
                if mu is None:
                    mu, eps = packed[:, :din], packed[:, din:]
                mu = jnp.dot(mu, w, preferred_element_type=jnp.float32) + b
                eps = jnp.dot(eps, wabs, preferred_element_type=jnp.float32)
            packed = None

            if li < n_layers - 1:                        # IntervalReLU (after every layer but last)
                zl = jnp.maximum(mu - eps, 0.0)
                zu = jnp.maximum(mu + eps, 0.0)
                mu = 0.5 * (zu + zl)
                eps = 0.5 * (zu - zl)

        if use_softmax:                                  # IntervalSoftmax (sound IBP bound)
            zl = mu - eps
            zu = mu + eps
            m = jnp.max(zu, axis=-1, keepdims=True)      # shift-invariant -> no exp overflow
            e_l = jnp.exp(zl - m)
            e_u = jnp.exp(zu - m)
            sum_l = jnp.sum(e_l, axis=-1, keepdims=True)
            sum_u = jnp.sum(e_u, axis=-1, keepdims=True)
            loo_u = jnp.maximum(sum_u - e_u, 0.0)        # leave-one-out sums, clamped >= 0
            loo_l = jnp.maximum(sum_l - e_l, 0.0)
            lower = e_l * pl.reciprocal(e_l + loo_u, approx=True)
            upper = e_u * pl.reciprocal(e_u + loo_l, approx=True)
            mu = 0.5 * (upper + lower)
            eps = 0.5 * (upper - lower)

        out_ref[:, :dim_out] = mu
        out_ref[:, dim_out:] = eps

    return kernel, n_param_refs


# -----------------------------------------------------------------------------
# Wrapper
# -----------------------------------------------------------------------------
def interval_mlp_forward(mu, eps, weights, biases, use_softmax=True,
                         param_dtype=jnp.bfloat16, tile_b=None):
    """weights[i]: (din_i, dout_i) == PyTorch weight.T ; biases[i]: (dout_i,) or (1, dout_i).

    NOTE: eps is assumed non-negative (same implicit assumption as the PyTorch module).
    """
    batch, dim_in = mu.shape
    dim_out = weights[-1].shape[1]

    if tile_b is None:
        tile_b = _pick_tile_b(batch)
    assert batch % tile_b == 0, "tile_b must divide the batch size"
    n_blocks = batch // tile_b

    plan, flat_params = _prepare_params(weights, biases, param_dtype)
    kernel, n_param_refs = _make_interval_mlp_kernel(plan, use_softmax)

    # lane-packed activations: one dense input instead of two narrow ones
    packed_in = jnp.concatenate([mu.astype(jnp.float32), eps.astype(jnp.float32)], axis=-1)

    # VMEM budget: pinned params (x2 for buffering) + activation tiles + headroom, clamped.
    param_bytes = sum(int(p.size) * p.dtype.itemsize for p in flat_params)
    max_width = max([2 * dim_in] + [2 * d for _, _, d in plan])
    act_bytes = 4 * tile_b * max_width
    vmem_limit = int(min(max(32 << 20, 2 * param_bytes + 16 * act_bytes + (2 << 20)), 100 << 20))

    in_specs = [pl.BlockSpec((tile_b, 2 * dim_in), lambda i: (i, 0))]
    in_specs += [pl.BlockSpec(p.shape, lambda i: (0, 0)) for p in flat_params]  # pinned / resident
    out_spec = pl.BlockSpec((tile_b, 2 * dim_out), lambda i: (i, 0))

    repack_w = _repack_width(plan)
    scratch_shapes = [pltpu.VMEM((tile_b, repack_w), jnp.float32)] if repack_w else []

    packed_out = pl.pallas_call(
        kernel,
        out_shape=jax.ShapeDtypeStruct((batch, 2 * dim_out), jnp.float32),
        grid=(n_blocks,),
        in_specs=in_specs,
        out_specs=out_spec,
        scratch_shapes=scratch_shapes,
        compiler_params=pltpu.CompilerParams(
            dimension_semantics=("parallel",),      # v7x: shard batch tiles across both TensorCores
            vmem_limit_bytes=vmem_limit,
        ),
    )(packed_in, *flat_params)

    mu_o = packed_out[:, :dim_out]
    eps_o = packed_out[:, dim_out:]
    return mu_o - eps_o, mu_o + eps_o, mu_o, eps_o


# -----------------------------------------------------------------------------
# Pure-JAX reference (same bf16 weight storage, same stabilized softmax bound)
# -----------------------------------------------------------------------------
def interval_mlp_reference(mu, eps, weights, biases, use_softmax=True, param_dtype=jnp.bfloat16):
    hp = jax.lax.Precision.HIGHEST
    mu = mu.astype(jnp.float32)
    eps = eps.astype(jnp.float32)
    n = len(weights)
    for i, (w, b) in enumerate(zip(weights, biases)):
        wq = w.astype(param_dtype).astype(jnp.float32)
        b = jnp.reshape(b, (1, -1)).astype(jnp.float32)
        mu = jnp.dot(mu, wq, precision=hp) + b
        eps = jnp.dot(eps, jnp.abs(wq), precision=hp)
        if i < n - 1:
            zl = jnp.maximum(mu - eps, 0.0)
            zu = jnp.maximum(mu + eps, 0.0)
            mu, eps = 0.5 * (zu + zl), 0.5 * (zu - zl)
    if use_softmax:
        zl, zu = mu - eps, mu + eps
        m = jnp.max(zu, axis=-1, keepdims=True)
        e_l, e_u = jnp.exp(zl - m), jnp.exp(zu - m)
        sum_l = jnp.sum(e_l, axis=-1, keepdims=True)
        sum_u = jnp.sum(e_u, axis=-1, keepdims=True)
        lower = e_l / (e_l + jnp.maximum(sum_u - e_u, 0.0))
        upper = e_u / (e_u + jnp.maximum(sum_l - e_l, 0.0))
        mu, eps = 0.5 * (upper + lower), 0.5 * (upper - lower)
    return mu - eps, mu + eps, mu, eps


# -----------------------------------------------------------------------------
# Deterministic parameter construction (PyTorch nn.Linear-style uniform init)
# -----------------------------------------------------------------------------
def build_params(key, num_layers, dim_in, dim_hidden, dim_out):
    dims = [dim_in, dim_hidden] + [dim_hidden] * num_layers + [dim_out]
    weights, biases = [], []
    for i in range(len(dims) - 1):
        din, dout = dims[i], dims[i + 1]
        key, kw, kb = jax.random.split(key, 3)
        bound = 1.0 / jnp.sqrt(jnp.float32(din))
        w = jax.random.uniform(kw, (din, dout), jnp.float32, -bound, bound)
        b = jax.random.uniform(kb, (1, dout), jnp.float32, -bound, bound)
        weights.append(w)
        biases.append(b)
    return weights, biases


if __name__ == "__main__":
    # IntervalMLP(num_layers=2, dim_in=4, dim_hidden=32, dim_out=4) -> linears 4->32->32->32->4
    num_layers, dim_in, dim_hidden, dim_out = 2, 4, 32, 4
    batch, tile_b = 256, 64          # 4 grid steps: exercises pipelining + pinned weights

    key = jax.random.PRNGKey(0)
    key, k_mu, k_eps = jax.random.split(key, 3)
    mu = jax.random.normal(k_mu, (batch, dim_in), jnp.float32)
    eps = jnp.abs(jax.random.normal(k_eps, (batch, dim_in), jnp.float32)) * 0.1
    weights, biases = build_params(key, num_layers, dim_in, dim_hidden, dim_out)

    # Tolerances account for MXU default-precision differences between the Pallas dot and the XLA
    # reference dot plus the approximate (EUP) reciprocal in the softmax; structural bugs would
    # show up as O(1) relative errors and still be caught.
    for use_softmax in (False, True):
        fwd = jax.jit(functools.partial(interval_mlp_forward,
                                        use_softmax=use_softmax, tile_b=tile_b))
        outs = fwd(mu, eps, weights, biases)
        jax.block_until_ready(outs)
        wants = interval_mlp_reference(mu, eps, weights, biases, use_softmax=use_softmax)
        for name, got, want in zip(("lo", "hi", "mu", "eps"), outs, wants):
            assert got.shape == want.shape, (name, got.shape, want.shape)
            err = float(jnp.max(jnp.abs(got - want)))
            assert jnp.allclose(got, want, rtol=2e-2, atol=1e-2), (
                f"{name} (use_softmax={use_softmax}) max abs err {err}")

    print("KERNEL_OK")
</pallas_src>

<mosaic_0001>
module attributes {stable_mosaic.version = 11 : i64} {
  func.func @kernel(%arg0: i32, %arg1: memref<64x8xf32, #tpu.memory_space<vmem>>, %arg2: memref<8x64xbf16, #tpu.memory_space<vmem>>, %arg3: memref<1x64xf32, #tpu.memory_space<vmem>>, %arg4: memref<64x64xbf16, #tpu.memory_space<vmem>>, %arg5: memref<1x64xf32, #tpu.memory_space<vmem>>, %arg6: memref<64x64xbf16, #tpu.memory_space<vmem>>, %arg7: memref<1x64xf32, #tpu.memory_space<vmem>>, %arg8: memref<64x8xbf16, #tpu.memory_space<vmem>>, %arg9: memref<1x8xf32, #tpu.memory_space<vmem>>, %arg10: memref<64x8xf32, #tpu.memory_space<vmem>>, %arg11: memref<64x64xf32, #tpu.memory_space<vmem>>) attributes {dimension_semantics = [#tpu.dimension_semantics<parallel>], iteration_bounds = array<i64: 4>, scalar_prefetch = 0 : i64, scratch_operands = 1 : i64, tpu.core_type = #tpu.core_type<tc>, window_params = [{transform_indices = @transform_0, window_bounds = array<i64: 64, 8>}, {pipeline_mode = #tpu.pipeline_mode<synchronous>, transform_indices = @transform_1, window_bounds = array<i64: 8, 64>}, {pipeline_mode = #tpu.pipeline_mode<synchronous>, transform_indices = @transform_2, window_bounds = array<i64: 1, 64>}, {pipeline_mode = #tpu.pipeline_mode<synchronous>, transform_indices = @transform_3, window_bounds = array<i64: 64, 64>}, {pipeline_mode = #tpu.pipeline_mode<synchronous>, transform_indices = @transform_4, window_bounds = array<i64: 1, 64>}, {pipeline_mode = #tpu.pipeline_mode<synchronous>, transform_indices = @transform_5, window_bounds = array<i64: 64, 64>}, {pipeline_mode = #tpu.pipeline_mode<synchronous>, transform_indices = @transform_6, window_bounds = array<i64: 1, 64>}, {pipeline_mode = #tpu.pipeline_mode<synchronous>, transform_indices = @transform_7, window_bounds = array<i64: 64, 8>}, {pipeline_mode = #tpu.pipeline_mode<synchronous>, transform_indices = @transform_8, window_bounds = array<i64: 1, 8>}, {transform_indices = @transform_9, window_bounds = array<i64: 64, 8>}]} {
    %c0 = arith.constant 0 : index
    %c0_0 = arith.constant 0 : index
    %0 = vector.load %arg1[%c0, %c0_0] : memref<64x8xf32, #tpu.memory_space<vmem>>, vector<64x8xf32>
    %c0_1 = arith.constant 0 : index
    %c0_2 = arith.constant 0 : index
    %1 = vector.load %arg2[%c0_1, %c0_2] : memref<8x64xbf16, #tpu.memory_space<vmem>>, vector<8x64xbf16>
    %2 = arith.extf %1 : vector<8x64xbf16> to vector<8x64xf32>
    %c0_3 = arith.constant 0 : index
    %c0_4 = arith.constant 0 : index
    %3 = vector.load %arg3[%c0_3, %c0_4] : memref<1x64xf32, #tpu.memory_space<vmem>>, vector<1x64xf32>
    %cst = arith.constant dense<0.000000e+00> : vector<64x64xf32>
    %4 = tpu.matmul %0, %2, %cst {dimension_numbers = #tpu.dot_dimension_numbers<[1], [0], [0], [1], [0, 0, 1, 1], [], []>} : vector<64x8xf32>, vector<8x64xf32>, vector<64x64xf32> -> vector<64x64xf32>
    %5 = vector.broadcast %3 : vector<1x64xf32> to vector<64x64xf32>
    %6 = arith.addf %4, %5 : vector<64x64xf32>
    %7 = vector.extract_strided_slice %6 {offsets = [0, 0], sizes = [64, 32], strides = [1, 1]} : vector<64x64xf32> to vector<64x32xf32>
    %8 = vector.extract_strided_slice %6 {offsets = [0, 32], sizes = [64, 32], strides = [1, 1]} : vector<64x64xf32> to vector<64x32xf32>
    %9 = arith.subf %7, %8 : vector<64x32xf32>
    %cst_5 = arith.constant 0.000000e+00 : f32
    %10 = vector.broadcast %cst_5 : f32 to vector<64x32xf32>
    %11 = arith.maximumf %9, %10 : vector<64x32xf32>
    %12 = arith.addf %7, %8 : vector<64x32xf32>
    %cst_6 = arith.constant 0.000000e+00 : f32
    %13 = vector.broadcast %cst_6 : f32 to vector<64x32xf32>
    %14 = arith.maximumf %12, %13 : vector<64x32xf32>
    %15 = arith.addf %14, %11 : vector<64x32xf32>
    %cst_7 = arith.constant 5.000000e-01 : f32
    %16 = vector.broadcast %cst_7 : f32 to vector<64x32xf32>
    %17 = arith.mulf %16, %15 : vector<64x32xf32>
    %18 = arith.subf %14, %11 : vector<64x32xf32>
    %cst_8 = arith.constant 5.000000e-01 : f32
    %19 = vector.broadcast %cst_8 : f32 to vector<64x32xf32>
    %20 = arith.mulf %19, %18 : vector<64x32xf32>
    %c0_9 = arith.constant 0 : index
    %c0_10 = arith.constant 0 : index
    %21 = vector.load %arg4[%c0_9, %c0_10] : memref<64x64xbf16, #tpu.memory_space<vmem>>, vector<64x64xbf16>
    %22 = arith.extf %21 : vector<64x64xbf16> to vector<64x64xf32>
    %c0_11 = arith.constant 0 : index
    %c0_12 = arith.constant 0 : index
    %23 = vector.load %arg5[%c0_11, %c0_12] : memref<1x64xf32, #tpu.memory_space<vmem>>, vector<1x64xf32>
    %c0_13 = arith.constant 0 : index
    %c0_14 = arith.constant 0 : index
    %24 = vector.load %arg11[%c0_13, %c0_14] : memref<64x64xf32, #tpu.memory_space<vmem>>, vector<64x32xf32>
    tpu.vector_store %arg11[%c0_13, %c0_14], %17 {strides = array<i32>} : memref<64x64xf32, #tpu.memory_space<vmem>>, vector<64x32xf32>,
    %c0_15 = arith.constant 0 : index
    %c32 = arith.constant 32 : index
    %25 = vector.load %arg11[%c0_15, %c32] : memref<64x64xf32, #tpu.memory_space<vmem>>, vector<64x32xf32>
    tpu.vector_store %arg11[%c0_15, %c32], %20 {strides = array<i32>} : memref<64x64xf32, #tpu.memory_space<vmem>>, vector<64x32xf32>,
    %c0_16 = arith.constant 0 : index
    %c0_17 = arith.constant 0 : index
    %26 = vector.load %arg11[%c0_16, %c0_17] : memref<64x64xf32, #tpu.memory_space<vmem>>, vector<64x64xf32>
    %cst_18 = arith.constant dense<0.000000e+00> : vector<64x64xf32>
    %27 = tpu.matmul %26, %22, %cst_18 {dimension_numbers = #tpu.dot_dimension_numbers<[1], [0], [0], [1], [0, 0, 1, 1], [], []>} : vector<64x64xf32>, vector<64x64xf32>, vector<64x64xf32> -> vector<64x64xf32>
    %28 = vector.broadcast %23 : vector<1x64xf32> to vector<64x64xf32>
    %29 = arith.addf %27, %28 : vector<64x64xf32>
    %30 = vector.extract_strided_slice %29 {offsets = [0, 0], sizes = [64, 32], strides = [1, 1]} : vector<64x64xf32> to vector<64x32xf32>
    %31 = vector.extract_strided_slice %29 {offsets = [0, 32], sizes = [64, 32], strides = [1, 1]} : vector<64x64xf32> to vector<64x32xf32>
    %32 = arith.subf %30, %31 : vector<64x32xf32>
    %cst_19 = arith.constant 0.000000e+00 : f32
    %33 = vector.broadcast %cst_19 : f32 to vector<64x32xf32>
    %34 = arith.maximumf %32, %33 : vector<64x32xf32>
    %35 = arith.addf %30, %31 : vector<64x32xf32>
    %cst_20 = arith.constant 0.000000e+00 : f32
    %36 = vector.broadcast %cst_20 : f32 to vector<64x32xf32>
    %37 = arith.maximumf %35, %36 : vector<64x32xf32>
    %38 = arith.addf %37, %34 : vector<64x32xf32>
    %cst_21 = arith.constant 5.000000e-01 : f32
    %39 = vector.broadcast %cst_21 : f32 to vector<64x32xf32>
    %40 = arith.mulf %39, %38 : vector<64x32xf32>
    %41 = arith.subf %37, %34 : vector<64x32xf32>
    %cst_22 = arith.constant 5.000000e-01 : f32
    %42 = vector.broadcast %cst_22 : f32 to vector<64x32xf32>
    %43 = arith.mulf %42, %41 : vector<64x32xf32>
    %c0_23 = arith.constant 0 : index
    %c0_24 = arith.constant 0 : index
    %44 = vector.load %arg6[%c0_23, %c0_24] : memref<64x64xbf16, #tpu.memory_space<vmem>>, vector<64x64xbf16>
    %45 = arith.extf %44 : vector<64x64xbf16> to vector<64x64xf32>
    %c0_25 = arith.constant 0 : index
    %c0_26 = arith.constant 0 : index
    %46 = vector.load %arg7[%c0_25, %c0_26] : memref<1x64xf32, #tpu.memory_space<vmem>>, vector<1x64xf32>
    %c0_27 = arith.constant 0 : index
    %c0_28 = arith.constant 0 : index
    %47 = vector.load %arg11[%c0_27, %c0_28] : memref<64x64xf32, #tpu.memory_space<vmem>>, vector<64x32xf32>
    tpu.vector_store %arg11[%c0_27, %c0_28], %40 {strides = array<i32>} : memref<64x64xf32, #tpu.memory_space<vmem>>, vector<64x32xf32>,
    %c0_29 = arith.constant 0 : index
    %c32_30 = arith.constant 32 : index
    %48 = vector.load %arg11[%c0_29, %c32_30] : memref<64x64xf32, #tpu.memory_space<vmem>>, vector<64x32xf32>
    tpu.vector_store %arg11[%c0_29, %c32_30], %43 {strides = array<i32>} : memref<64x64xf32, #tpu.memory_space<vmem>>, vector<64x32xf32>,
    %c0_31 = arith.constant 0 : index
    %c0_32 = arith.constant 0 : index
    %49 = vector.load %arg11[%c0_31, %c0_32] : memref<64x64xf32, #tpu.memory_space<vmem>>, vector<64x64xf32>
    %cst_33 = arith.constant dense<0.000000e+00> : vector<64x64xf32>
    %50 = tpu.matmul %49, %45, %cst_33 {dimension_numbers = #tpu.dot_dimension_numbers<[1], [0], [0], [1], [0, 0, 1, 1], [], []>} : vector<64x64xf32>, vector<64x64xf32>, vector<64x64xf32> -> vector<64x64xf32>
    %51 = vector.broadcast %46 : vector<1x64xf32> to vector<64x64xf32>
    %52 = arith.addf %50, %51 : vector<64x64xf32>
    %53 = vector.extract_strided_slice %52 {offsets = [0, 0], sizes = [64, 32], strides = [1, 1]} : vector<64x64xf32> to vector<64x32xf32>
    %54 = vector.extract_strided_slice %52 {offsets = [0, 32], sizes = [64, 32], strides = [1, 1]} : vector<64x64xf32> to vector<64x32xf32>
    %55 = arith.subf %53, %54 : vector<64x32xf32>
    %cst_34 = arith.constant 0.000000e+00 : f32
    %56 = vector.broadcast %cst_34 : f32 to vector<64x32xf32>
    %57 = arith.maximumf %55, %56 : vector<64x32xf32>
    %58 = arith.addf %53, %54 : vector<64x32xf32>
    %cst_35 = arith.constant 0.000000e+00 : f32
    %59 = vector.broadcast %cst_35 : f32 to vector<64x32xf32>
    %60 = arith.maximumf %58, %59 : vector<64x32xf32>
    %61 = arith.addf %60, %57 : vector<64x32xf32>
    %cst_36 = arith.constant 5.000000e-01 : f32
    %62 = vector.broadcast %cst_36 : f32 to vector<64x32xf32>
    %63 = arith.mulf %62, %61 : vector<64x32xf32>
    %64 = arith.subf %60, %57 : vector<64x32xf32>
    %cst_37 = arith.constant 5.000000e-01 : f32
    %65 = vector.broadcast %cst_37 : f32 to vector<64x32xf32>
    %66 = arith.mulf %65, %64 : vector<64x32xf32>
    %c0_38 = arith.constant 0 : index
    %c0_39 = arith.constant 0 : index
    %67 = vector.load %arg8[%c0_38, %c0_39] : memref<64x8xbf16, #tpu.memory_space<vmem>>, vector<64x8xbf16>
    %68 = arith.extf %67 : vector<64x8xbf16> to vector<64x8xf32>
    %c0_40 = arith.constant 0 : index
    %c0_41 = arith.constant 0 : index
    %69 = vector.load %arg9[%c0_40, %c0_41] : memref<1x8xf32, #tpu.memory_space<vmem>>, vector<1x8xf32>
    %c0_42 = arith.constant 0 : index
    %c0_43 = arith.constant 0 : index
    %70 = vector.load %arg11[%c0_42, %c0_43] : memref<64x64xf32, #tpu.memory_space<vmem>>, vector<64x32xf32>
    tpu.vector_store %arg11[%c0_42, %c0_43], %63 {strides = array<i32>} : memref<64x64xf32, #tpu.memory_space<vmem>>, vector<64x32xf32>,
    %c0_44 = arith.constant 0 : index
    %c32_45 = arith.constant 32 : index
    %71 = vector.load %arg11[%c0_44, %c32_45] : memref<64x64xf32, #tpu.memory_space<vmem>>, vector<64x32xf32>
    tpu.vector_store %arg11[%c0_44, %c32_45], %66 {strides = array<i32>} : memref<64x64xf32, #tpu.memory_space<vmem>>, vector<64x32xf32>,
    %c0_46 = arith.constant 0 : index
    %c0_47 = arith.constant 0 : index
    %72 = vector.load %arg11[%c0_46, %c0_47] : memref<64x64xf32, #tpu.memory_space<vmem>>, vector<64x64xf32>
    %cst_48 = arith.constant dense<0.000000e+00> : vector<64x8xf32>
    %73 = tpu.matmul %72, %68, %cst_48 {dimension_numbers = #tpu.dot_dimension_numbers<[1], [0], [0], [1], [0, 0, 1, 1], [], []>} : vector<64x64xf32>, vector<64x8xf32>, vector<64x8xf32> -> vector<64x8xf32>
    %74 = vector.broadcast %69 : vector<1x8xf32> to vector<64x8xf32>
    %75 = arith.addf %73, %74 : vector<64x8xf32>
    %76 = vector.extract_strided_slice %75 {offsets = [0, 0], sizes = [64, 4], strides = [1, 1]} : vector<64x8xf32> to vector<64x4xf32>
    %77 = vector.extract_strided_slice %75 {offsets = [0, 4], sizes = [64, 4], strides = [1, 1]} : vector<64x8xf32> to vector<64x4xf32>
    %c0_49 = arith.constant 0 : index
    %c0_50 = arith.constant 0 : index
    %78 = vector.load %arg10[%c0_49, %c0_50] : memref<64x8xf32, #tpu.memory_space<vmem>>, vector<64x4xf32>
    tpu.vector_store %arg10[%c0_49, %c0_50], %76 {strides = array<i32>} : memref<64x8xf32, #tpu.memory_space<vmem>>, vector<64x4xf32>,
    %c0_51 = arith.constant 0 : index
    %c4 = arith.constant 4 : index
    %79 = vector.load %arg10[%c0_51, %c4] : memref<64x8xf32, #tpu.memory_space<vmem>>, vector<64x4xf32>
    tpu.vector_store %arg10[%c0_51, %c4], %77 {strides = array<i32>} : memref<64x8xf32, #tpu.memory_space<vmem>>, vector<64x4xf32>,
    return
  }
  func.func @transform_0(%arg0: i32) -> (i32, i32) {
    %c0_i32 = arith.constant 0 : i32
    %c0_i32_0 = arith.constant 0 : i32
    return %arg0, %c0_i32 : i32, i32
  }
  func.func @transform_1(%arg0: i32) -> (i32, i32) {
    %c0_i32 = arith.constant 0 : i32
    %c0_i32_0 = arith.constant 0 : i32
    %c0_i32_1 = arith.constant 0 : i32
    return %c0_i32, %c0_i32_0 : i32, i32
  }
  func.func @transform_2(%arg0: i32) -> (i32, i32) {
    %c0_i32 = arith.constant 0 : i32
    %c0_i32_0 = arith.constant 0 : i32
    %c0_i32_1 = arith.constant 0 : i32
    return %c0_i32, %c0_i32_0 : i32, i32
  }
  func.func @transform_3(%arg0: i32) -> (i32, i32) {
    %c0_i32 = arith.constant 0 : i32
    %c0_i32_0 = arith.constant 0 : i32
    %c0_i32_1 = arith.constant 0 : i32
    return %c0_i32, %c0_i32_0 : i32, i32
  }
  func.func @transform_4(%arg0: i32) -> (i32, i32) {
    %c0_i32 = arith.constant 0 : i32
    %c0_i32_0 = arith.constant 0 : i32
    %c0_i32_1 = arith.constant 0 : i32
    return %c0_i32, %c0_i32_0 : i32, i32
  }
  func.func @transform_5(%arg0: i32) -> (i32, i32) {
    %c0_i32 = arith.constant 0 : i32
    %c0_i32_0 = arith.constant 0 : i32
    %c0_i32_1 = arith.constant 0 : i32
    return %c0_i32, %c0_i32_0 : i32, i32
  }
  func.func @transform_6(%arg0: i32) -> (i32, i32) {
    %c0_i32 = arith.constant 0 : i32
    %c0_i32_0 = arith.constant 0 : i32
    %c0_i32_1 = arith.constant 0 : i32
    return %c0_i32, %c0_i32_0 : i32, i32
  }
  func.func @transform_7(%arg0: i32) -> (i32, i32) {
    %c0_i32 = arith.constant 0 : i32
    %c0_i32_0 = arith.constant 0 : i32
    %c0_i32_1 = arith.constant 0 : i32
    return %c0_i32, %c0_i32_0 : i32, i32
  }
  func.func @transform_8(%arg0: i32) -> (i32, i32) {
    %c0_i32 = arith.constant 0 : i32
    %c0_i32_0 = arith.constant 0 : i32
    %c0_i32_1 = arith.constant 0 : i32
    return %c0_i32, %c0_i32_0 : i32, i32
  }
  func.func @transform_9(%arg0: i32) -> (i32, i32) {
    %c0_i32 = arith.constant 0 : i32
    %c0_i32_0 = arith.constant 0 : i32
    return %arg0, %c0_i32 : i32, i32
  }
}

</mosaic_0001>

<llo_original>
// kernel: interval_mlp_forward.1
$region0: #{interval_mlp_forward.1}
  #allocation0 [shape = 'u32[]', space=smem, size = 0x4, offset = 0x4, fixed_abs, tag = 'smem constant byte address 0x4 - core index']
  #allocation1 [shape = 'u32[144,128]{1,0:T(1,128)}', space=vmem, size = 0x12000, scoped, tag = 'internal scratch']
  #allocation2 [shape = 'f32[64,64]{1,0:T(8,128)}', space=vmem, size = 0x8000, scoped, tag = 'scratch operand']
  %s0 = inlined_call_operand.vmem [shape: f32[256,8], index: 0, kind: input, shape index: {}]
  %s1 = inlined_call_operand.vmem [shape: bf16[8,64], index: 1, kind: input, shape index: {}]
  %s2 = inlined_call_operand.vmem [shape: f32[1,64], index: 2, kind: input, shape index: {}]
  %s3 = inlined_call_operand.vmem [shape: bf16[64,64], index: 3, kind: input, shape index: {}]
  %s4 = inlined_call_operand.vmem [shape: f32[1,64], index: 4, kind: input, shape index: {}]
  %s5 = inlined_call_operand.vmem [shape: bf16[64,64], index: 5, kind: input, shape index: {}]
  %s6 = inlined_call_operand.vmem [shape: f32[1,64], index: 6, kind: input, shape index: {}]
  %s7 = inlined_call_operand.vmem [shape: bf16[64,8], index: 7, kind: input, shape index: {}]
  %s8 = inlined_call_operand.vmem [shape: f32[1,8], index: 8, kind: input, shape index: {}]
  %s9 = inlined_call_operand.vmem [shape: f32[256,8], index: 9, kind: output, shape index: {}]
  %s10 = sld [smem:[#allocation0]]
  $region69: #{interval_mlp_forward.1} parent=0
    _
  %s12 = ssub.s32 1, %s10
  %s13 = scalar_select 0, %s12, %s10
  loop: start=0, step=1, limit=6
  $region2: #{interval_mlp_forward.1} parent=0 // loop_pre_header
    _
  $region3: #{interval_mlp_forward.1} parent=0 // loop_header
    %s15 = sphi 0, %s19
    %p16 = scmp.ge.s32.totalorder %s15, 6
    %s25 = sphi 0, %s27
    %s28 = sphi 0, %s25
    %s29 = sphi 0, %s28
    %s45 = sphi 0, %s29
    %s49 = sphi 0, %s49
    %s51 = sphi 0, %s49
    %s52 = sphi 0, %s51
    %s66 = sphi 0, %s52
    %s70 = sphi 0, %s70
    %s72 = sphi 0, %s70
    %s73 = sphi 0, %s72
    %s87 = sphi 0, %s73
    %s91 = sphi 0, %s91
    %s93 = sphi 0, %s91
    %s94 = sphi 0, %s93
    %s108 = sphi 0, %s94
    %s112 = sphi 0, %s112
    %s114 = sphi 0, %s112
    %s115 = sphi 0, %s114
    %s129 = sphi 0, %s115
    %s133 = sphi 0, %s133
    %s135 = sphi 0, %s133
    %s136 = sphi 0, %s135
    %s150 = sphi 0, %s136
    %s154 = sphi 0, %s154
    %s156 = sphi 0, %s154
    %s157 = sphi 0, %s156
    %s171 = sphi 0, %s157
    %s175 = sphi 0, %s175
    %s177 = sphi 0, %s175
    %s178 = sphi 0, %s177
    %s192 = sphi 0, %s178
    %s196 = sphi 0, %s196
    %s198 = sphi 0, %s196
    %s199 = sphi 0, %s198
    %s213 = sphi 0, %s199
    %s219 = sphi 0, %s221
    %s222 = sphi 0, %s219
    %s223 = sphi 0, %s222
    %s239 = sphi 0, %s223
  $region4: #{interval_mlp_forward.1} parent=0 // loop_header_branch
    %18 = sbr.rel (%p16) target = $region8
  $region5: #{interval_mlp_forward.1} parent=0 // loop_body
    %s20 = ssub.s32 %s15, 1
    %s21 = ssub.s32 %s15, 2
    %s22 = sadd.s32 %s15, 1
    %s23 = ssub.s32 %s15, %s22
    %p24 = scmp.eq.s32.totalorder %s23, 0
    %s26 = sadd.s32 %s25, 1
    %s27 = scalar_select %p24, %s25, %s26
    %p30 = pneg %p24
    %p31 = scmp.eq.s32.totalorder %s15, 3
    %p32 = por %p30, %p31
    %p33 = scmp.ne.s32.totalorder %s25, %s28
    %p34 = scmp.eq.s32.totalorder %s15, 0
    %p35 = por %p33, %p34
    %p36 = scmp.ne.s32.totalorder %s25, %s28
    %p37 = scmp.eq.s32.totalorder %s20, 3
    %p38 = por %p36, %p37
    %p39 = scmp.ne.s32.totalorder %s28, %s29
    %p40 = scmp.eq.s32.totalorder %s20, 0
    %p41 = por %p39, %p40
    %p42 = scmp.ne.s32.totalorder %s28, %s29
    %p43 = scmp.eq.s32.totalorder %s21, 3
    %p44 = por %p42, %p43
    %p46 = scmp.ne.s32.totalorder %s29, %s45
    %p47 = scmp.eq.s32.totalorder %s21, 0
    %p48 = por %p46, %p47
    %s50 = sadd.s32 %s49, 1
    %p53 = scmp.eq.s32.totalorder %s15, 3
    %p54 = scmp.ne.s32.totalorder %s49, %s51
    %p55 = scmp.eq.s32.totalorder %s15, 0
    %p56 = por %p54, %p55
    %p57 = scmp.ne.s32.totalorder %s49, %s51
    %p58 = scmp.eq.s32.totalorder %s20, 3
    %p59 = por %p57, %p58
    %p60 = scmp.ne.s32.totalorder %s51, %s52
    %p61 = scmp.eq.s32.totalorder %s20, 0
    %p62 = por %p60, %p61
    %p63 = scmp.ne.s32.totalorder %s51, %s52
    %p64 = scmp.eq.s32.totalorder %s21, 3
    %p65 = por %p63, %p64
    %p67 = scmp.ne.s32.totalorder %s52, %s66
    %p68 = scmp.eq.s32.totalorder %s21, 0
    %p69 = por %p67, %p68
    %s71 = sadd.s32 %s70, 1
    %p74 = scmp.eq.s32.totalorder %s15, 3
    %p75 = scmp.ne.s32.totalorder %s70, %s72
    %p76 = scmp.eq.s32.totalorder %s15, 0
    %p77 = por %p75, %p76
    %p78 = scmp.ne.s32.totalorder %s70, %s72
    %p79 = scmp.eq.s32.totalorder %s20, 3
    %p80 = por %p78, %p79
    %p81 = scmp.ne.s32.totalorder %s72, %s73
    %p82 = scmp.eq.s32.totalorder %s20, 0
    %p83 = por %p81, %p82
    %p84 = scmp.ne.s32.totalorder %s72, %s73
    %p85 = scmp.eq.s32.totalorder %s21, 3
    %p86 = por %p84, %p85
    %p88 = scmp.ne.s32.totalorder %s73, %s87
    %p89 = scmp.eq.s32.totalorder %s21, 0
    %p90 = por %p88, %p89
    %s92 = sadd.s32 %s91, 1
    %p95 = scmp.eq.s32.totalorder %s15, 3
    %p96 = scmp.ne.s32.totalorder %s91, %s93
    %p97 = scmp.eq.s32.totalorder %s15, 0
    %p98 = por %p96, %p97
    %p99 = scmp.ne.s32.totalorder %s91, %s93
    %p100 = scmp.eq.s32.totalorder %s20, 3
    %p101 = por %p99, %p100
    %p102 = scmp.ne.s32.totalorder %s93, %s94
    %p103 = scmp.eq.s32.totalorder %s20, 0
    %p104 = por %p102, %p103
    %p105 = scmp.ne.s32.totalorder %s93, %s94
    %p106 = scmp.eq.s32.totalorder %s21, 3
    %p107 = por %p105, %p106
    %p109 = scmp.ne.s32.totalorder %s94, %s108
    %p110 = scmp.eq.s32.totalorder %s21, 0
    %p111 = por %p109, %p110
    %s113 = sadd.s32 %s112, 1
    %p116 = scmp.eq.s32.totalorder %s15, 3
    %p117 = scmp.ne.s32.totalorder %s112, %s114
    %p118 = scmp.eq.s32.totalorder %s15, 0
    %p119 = por %p117, %p118
    %p120 = scmp.ne.s32.totalorder %s112, %s114
    %p121 = scmp.eq.s32.totalorder %s20, 3
    %p122 = por %p120, %p121
    %p123 = scmp.ne.s32.totalorder %s114, %s115
    %p124 = scmp.eq.s32.totalorder %s20, 0
    %p125 = por %p123, %p124
    %p126 = scmp.ne.s32.totalorder %s114, %s115
    %p127 = scmp.eq.s32.totalorder %s21, 3
    %p128 = por %p126, %p127
    %p130 = scmp.ne.s32.totalorder %s115, %s129
    %p131 = scmp.eq.s32.totalorder %s21, 0
    %p132 = por %p130, %p131
    %s134 = sadd.s32 %s133, 1
    %p137 = scmp.eq.s32.totalorder %s15, 3
    %p138 = scmp.ne.s32.totalorder %s133, %s135
    %p139 = scmp.eq.s32.totalorder %s15, 0
    %p140 = por %p138, %p139
    %p141 = scmp.ne.s32.totalorder %s133, %s135
    %p142 = scmp.eq.s32.totalorder %s20, 3
    %p143 = por %p141, %p142
    %p144 = scmp.ne.s32.totalorder %s135, %s136
    %p145 = scmp.eq.s32.totalorder %s20, 0
    %p146 = por %p144, %p145
    %p147 = scmp.ne.s32.totalorder %s135, %s136
    %p148 = scmp.eq.s32.totalorder %s21, 3
    %p149 = por %p147, %p148
    %p151 = scmp.ne.s32.totalorder %s136, %s150
    %p152 = scmp.eq.s32.totalorder %s21, 0
    %p153 = por %p151, %p152
    %s155 = sadd.s32 %s154, 1
    %p158 = scmp.eq.s32.totalorder %s15, 3
    %p159 = scmp.ne.s32.totalorder %s154, %s156
    %p160 = scmp.eq.s32.totalorder %s15, 0
    %p161 = por %p159, %p160
    %p162 = scmp.ne.s32.totalorder %s154, %s156
    %p163 = scmp.eq.s32.totalorder %s20, 3
    %p164 = por %p162, %p163
    %p165 = scmp.ne.s32.totalorder %s156, %s157
    %p166 = scmp.eq.s32.totalorder %s20, 0
    %p167 = por %p165, %p166
    %p168 = scmp.ne.s32.totalorder %s156, %s157
    %p169 = scmp.eq.s32.totalorder %s21, 3
    %p170 = por %p168, %p169
    %p172 = scmp.ne.s32.totalorder %s157, %s171
    %p173 = scmp.eq.s32.totalorder %s21, 0
    %p174 = por %p172, %p173
    %s176 = sadd.s32 %s175, 1
    %p179 = scmp.eq.s32.totalorder %s15, 3
    %p180 = scmp.ne.s32.totalorder %s175, %s177
    %p181 = scmp.eq.s32.totalorder %s15, 0
    %p182 = por %p180, %p181
    %p183 = scmp.ne.s32.totalorder %s175, %s177
    %p184 = scmp.eq.s32.totalorder %s20, 3
    %p185 = por %p183, %p184
    %p186 = scmp.ne.s32.totalorder %s177, %s178
    %p187 = scmp.eq.s32.totalorder %s20, 0
    %p188 = por %p186, %p187
    %p189 = scmp.ne.s32.totalorder %s177, %s178
    %p190 = scmp.eq.s32.totalorder %s21, 3
    %p191 = por %p189, %p190
    %p193 = scmp.ne.s32.totalorder %s178, %s192
    %p194 = scmp.eq.s32.totalorder %s21, 0
    %p195 = por %p193, %p194
    %s197 = sadd.s32 %s196, 1
    %p200 = scmp.eq.s32.totalorder %s15, 3
    %p201 = scmp.ne.s32.totalorder %s196, %s198
    %p202 = scmp.eq.s32.totalorder %s15, 0
    %p203 = por %p201, %p202
    %p204 = scmp.ne.s32.totalorder %s196, %s198
    %p205 = scmp.eq.s32.totalorder %s20, 3
    %p206 = por %p204, %p205
    %p207 = scmp.ne.s32.totalorder %s198, %s199
    %p208 = scmp.eq.s32.totalorder %s20, 0
    %p209 = por %p207, %p208
    %p210 = scmp.ne.s32.totalorder %s198, %s199
    %p211 = scmp.eq.s32.totalorder %s21, 3
    %p212 = por %p210, %p211
    %p214 = scmp.ne.s32.totalorder %s199, %s213
    %p215 = scmp.eq.s32.totalorder %s21, 0
    %p216 = por %p214, %p215
    %s217 = ssub.s32 %s15, %s22
    %p218 = scmp.eq.s32.totalorder %s217, 0
    %s220 = sadd.s32 %s219, 1
    %s221 = scalar_select %p218, %s219, %s220
    %p224 = pneg %p218
    %p225 = scmp.eq.s32.totalorder %s15, 3
    %p226 = por %p224, %p225
    %p227 = scmp.ne.s32.totalorder %s219, %s222
    %p228 = scmp.eq.s32.totalorder %s15, 0
    %p229 = por %p227, %p228
    %p230 = scmp.ne.s32.totalorder %s219, %s222
    %p231 = scmp.eq.s32.totalorder %s20, 3
    %p232 = por %p230, %p231
    %p233 = scmp.ne.s32.totalorder %s222, %s223
    %p234 = scmp.eq.s32.totalorder %s20, 0
    %p235 = por %p233, %p234
    %p236 = scmp.ne.s32.totalorder %s222, %s223
    %p237 = scmp.eq.s32.totalorder %s21, 3
    %p238 = por %p236, %p237
    %p240 = scmp.ne.s32.totalorder %s223, %s239
    %p241 = scmp.eq.s32.totalorder %s21, 0
    %p242 = por %p240, %p241
    %p243 = scmp.le.s32.totalorder 1, %s15
    %p244 = scmp.lt.s32.totalorder %s15, 5
    %p245 = pnand %p243, %p244
    %p246 = pneg %p245
    // Predicated region
    $region9: #{interval_mlp_forward.1} parent=5 // pred_check
      _
    $region10: #{interval_mlp_forward.1} parent=5 // pred_check_branch
      %248 = sbr.rel (%p245) target = $region12
    $region11: #{interval_mlp_forward.1} parent=5 // pred_region
      %s249 = ssub.s32 %s15, 1
      // Predicated region
      $region13: #{interval_mlp_forward.1} parent=11 // pred_check
        %p250 = pneg %p62
      $region14: #{interval_mlp_forward.1} parent=11 // pred_check_branch
        %252 = sbr.rel (%p250) target = $region16
      $region15: #{interval_mlp_forward.1} parent=11 // pred_region
        _
      $region16: #{interval_mlp_forward.1} parent=11 // pred_fallthru
        _
      // Predicated region
      $region17: #{interval_mlp_forward.1} parent=11 // pred_check
        %p253 = pneg %p83
      $region18: #{interval_mlp_forward.1} parent=11 // pred_check_branch
        %255 = sbr.rel (%p253) target = $region20
      $region19: #{interval_mlp_forward.1} parent=11 // pred_region
        _
      $region20: #{interval_mlp_forward.1} parent=11 // pred_fallthru
        _
      // Predicated region
      $region21: #{interval_mlp_forward.1} parent=11 // pred_check
        %p256 = pneg %p104
      $region22: #{interval_mlp_forward.1} parent=11 // pred_check_branch
        %258 = sbr.rel (%p256) target = $region24
      $region23: #{interval_mlp_forward.1} parent=11 // pred_region
        _
      $region24: #{interval_mlp_forward.1} parent=11 // pred_fallthru
        _
      // Predicated region
      $region25: #{interval_mlp_forward.1} parent=11 // pred_check
        %p259 = pneg %p125
      $region26: #{interval_mlp_forward.1} parent=11 // pred_check_branch
        %261 = sbr.rel (%p259) target = $region28
      $region27: #{interval_mlp_forward.1} parent=11 // pred_region
        _
      $region28: #{interval_mlp_forward.1} parent=11 // pred_fallthru
        _
      // Predicated region
      $region29: #{interval_mlp_forward.1} parent=11 // pred_check
        %p262 = pneg %p146
      $region30: #{interval_mlp_forward.1} parent=11 // pred_check_branch
        %264 = sbr.rel (%p262) target = $region32
      $region31: #{interval_mlp_forward.1} parent=11 // pred_region
        _
      $region32: #{interval_mlp_forward.1} parent=11 // pred_fallthru
        _
      // Predicated region
      $region33: #{interval_mlp_forward.1} parent=11 // pred_check
        %p265 = pneg %p167
      $region34: #{interval_mlp_forward.1} parent=11 // pred_check_branch
        %267 = sbr.rel (%p265) target = $region36
      $region35: #{interval_mlp_forward.1} parent=11 // pred_region
        _
      $region36: #{interval_mlp_forward.1} parent=11 // pred_fallthru
        _
      // Predicated region
      $region37: #{interval_mlp_forward.1} parent=11 // pred_check
        %p268 = pneg %p188
      $region38: #{interval_mlp_forward.1} parent=11 // pred_check_branch
        %270 = sbr.rel (%p268) target = $region40
      $region39: #{interval_mlp_forward.1} parent=11 // pred_region
        _
      $region40: #{interval_mlp_forward.1} parent=11 // pred_fallthru
        _
      // Predicated region
      $region41: #{interval_mlp_forward.1} parent=11 // pred_check
        %p271 = pneg %p209
      $region42: #{interval_mlp_forward.1} parent=11 // pred_check_branch
        %273 = sbr.rel (%p271) target = $region44
      $region43: #{interval_mlp_forward.1} parent=11 // pred_region
        _
      $region44: #{interval_mlp_forward.1} parent=11 // pred_fallthru
        _
    $region12: #{interval_mlp_forward.1} parent=5 // pred_fallthru
      _
    %p274 = scmp.lt.s32.totalorder %s15, 4
    // Predicated region
    $region45: #{interval_mlp_forward.1} parent=5 // pred_check
      %p275 = pneg %p274
    $region46: #{interval_mlp_forward.1} parent=5 // pred_check_branch
      %277 = sbr.rel (%p275) target = $region48
    $region47: #{interval_mlp_forward.1} parent=5 // pred_region
      // Predicated region
      $region49: #{interval_mlp_forward.1} parent=47 // pred_check
        %p278 = pneg %p35
      $region50: #{interval_mlp_forward.1} parent=47 // pred_check_branch
        %280 = sbr.rel (%p278) target = $region52
      $region51: #{interval_mlp_forward.1} parent=47 // pred_region
        %s281 = smul.u32 8, %s15
        %p282 = scmp.lt.s32.totalorder %s281, 31
        %s283 = scalar_select %p282, %s281, 31
        %s284 = smul.addr %s283, 8
        %s285 = scalar_lea.vmem %s0, %s284
        %s286 = smul.u32 8, %s15
      $region52: #{interval_mlp_forward.1} parent=47 // pred_fallthru
        _
    $region48: #{interval_mlp_forward.1} parent=5 // pred_fallthru
      _
    %p287 = scmp.le.s32.totalorder 1, %s15
    %p288 = scmp.lt.s32.totalorder %s15, 5
    %p289 = pnand %p287, %p288
    %p290 = pneg %p289
    // Predicated region
    $region53: #{interval_mlp_forward.1} parent=5 // pred_check
      _
    $region54: #{interval_mlp_forward.1} parent=5 // pred_check_branch
      %292 = sbr.rel (%p289) target = $region56
    $region55: #{interval_mlp_forward.1} parent=5 // pred_region
      %s293 = ssub.s32 %s15, 1
      %s294 = smul.u32 8, %s20
      %p295 = scmp.lt.s32.totalorder %s294, 31
      %s296 = scalar_select %p295, %s294, 31
      %s297 = smul.addr %s296, 8
      %s298 = scalar_lea.vmem %s0, %s297
      %p299 = pneg %p41
      %p300 = pneg %p38
      %p301 = pneg %p62
      %p302 = pneg %p59
      %p303 = pneg %p83
      %p304 = pneg %p80
      %p305 = pneg %p104
      %p306 = pneg %p101
      %p307 = pneg %p125
      %p308 = pneg %p122
      %p309 = pneg %p146
      %p310 = pneg %p143
      %p311 = pneg %p167
      %p312 = pneg %p164
      %p313 = pneg %p188
      %p314 = pneg %p185
      %p315 = pneg %p209
      %p316 = pneg %p206
      %p317 = pneg %p235
      %p318 = pneg %p232
      %s319 = smul.u32 8, %s20
      %p320 = scmp.lt.s32.totalorder %s319, 31
      %s321 = scalar_select %p320, %s319, 31
      %s322 = smul.addr %s321, 8
      %s323 = scalar_lea.vmem %s9, %s322
      %s324 = smul.u32 8, %s20
      %p325 = scmp.lt.s32.totalorder %s324, 31
      %s326 = scalar_select %p325, %s324, 31
      %s327 = smul.addr %s326, 8
      %s328 = scalar_lea.vmem %s0, %s327
      %s329 = smul.u32 8, %s20
      %s330 = smul.u32 8, %s20
      %p331 = scmp.lt.s32.totalorder %s330, 31
      %s332 = scalar_select %p331, %s330, 31
      %s333 = smul.addr %s332, 8
      %s334 = scalar_lea.vmem %s9, %s333
      %s335 = smul.u32 8, %s20
      %v336 = vld [vmem:[%s328] sm:$0xff]
      %v337 = vld [vmem:[%s328 + $0x8] sm:$0xff]
      %v338 = vld [vmem:[%s328 + $0x10] sm:$0xff]
      %v339 = vld [vmem:[%s328 + $0x18] sm:$0xff]
      %v340 = vld [vmem:[%s328 + $0x20] sm:$0xff]
      %v341 = vld [vmem:[%s328 + $0x28] sm:$0xff]
      %v342 = vld [vmem:[%s328 + $0x30] sm:$0xff]
      %v343 = vld [vmem:[%s328 + $0x38] sm:$0xff]
      %v344 = vld [vmem:[%s1] sm:$0xf]
      %v345 = vunpack.c.l.bf16 %v344
      %v346 = vld [vmem:[%s2] sm:$0x1]
      %v348 = vlaneseq
      %v349 = vshrl.u32 %v348, 7
      %v350 = vsub.s32 0, %v349
      %v351 = vrot.slane %v346, %v350
      %vm353 = vcmask 64512
      %v355 = vsel %vm353, %v336, 0
      %v358 = vsel %vm353, %v337, 0
      %v361 = vsel %vm353, %v338, 0
      %v364 = vsel %vm353, %v339, 0
      %v367 = vsel %vm353, %v340, 0
      %v370 = vsel %vm353, %v341, 0
      %v373 = vsel %vm353, %v342, 0
      %v376 = vsel %vm353, %v343, 0
      %378 = vmatprep.subr.mxu0 0.0
      %379 = vmatpush1.msra.mxu0 %v345
      %380 = vmatprep.subr.mxu0 0.0
      %381 = vmatpush1.msra.mxu0 0.0
      %382 = vmatprep.subr.mxu0 0.0
      %383 = vmatpush1.msra.mxu0 0.0
      %384 = vmatprep.subr.mxu0 0.0
      %385 = vmatpush1.msra.mxu0 0.0
      %386 = vmatprep.subr.mxu0 0.0
      %387 = vmatpush1.msra.mxu0 0.0
      %388 = vmatprep.subr.mxu0 0.0
      %389 = vmatpush1.msra.mxu0 0.0
      %390 = vmatprep.subr.mxu0 0.0
      %391 = vmatpush1.msra.mxu0 0.0
      %392 = vmatprep.subr.mxu0 0.0
      %393 = vmatpush1.msra.mxu0 0.0
      %394 = vmatprep.subr.mxu0 0.0
      %395 = vmatpush1.msra.mxu0 0.0
      %396 = vmatprep.subr.mxu0 0.0
      %397 = vmatpush1.msra.mxu0 0.0
      %398 = vmatprep.subr.mxu0 0.0
      %399 = vmatpush1.msra.mxu0 0.0
      %400 = vmatprep.subr.mxu0 0.0
      %401 = vmatpush1.msra.mxu0 0.0
      %402 = vmatprep.subr.mxu0 0.0
      %403 = vmatpush1.msra.mxu0 0.0
      %404 = vmatprep.subr.mxu0 0.0
      %405 = vmatpush1.msra.mxu0 0.0
      %406 = vmatprep.subr.mxu0 0.0
      %407 = vmatpush1.msra.mxu0 0.0
      %408 = vmatprep.subr.mxu0 0.0
      %409 = vmatpush1.msra.mxu0 0.0
      %410 = vmatprep.subr.mxu0 0.0
      %411 = vmatpush1.msra.mxu0 0.0
      %412 = vmatprep.subr.mxu0 0.0
      %413 = vmatpush1.msra.mxu0 0.0
      %414 = vmatprep.subr.mxu0 0.0
      %415 = vmatpush1.msra.mxu0 0.0
      %416 = vmatprep.subr.mxu0 0.0
      %417 = vmatpush1.msra.mxu0 0.0
      %418 = vmatprep.subr.mxu0 0.0
      %419 = vmatpush1.msra.mxu0 0.0
      %420 = vmatprep.subr.mxu0 0.0
      %421 = vmatpush1.msra.mxu0 0.0
      %422 = vmatprep.subr.mxu0 0.0
      %423 = vmatpush1.msra.mxu0 0.0
      %424 = vmatprep.subr.mxu0 0.0
      %425 = vmatpush1.msra.mxu0 0.0
      %426 = vmatprep.subr.mxu0 0.0
      %427 = vmatpush1.msra.mxu0 0.0
      %428 = vmatprep.subr.mxu0 0.0
      %429 = vmatpush1.msra.mxu0 0.0
      %430 = vmatprep.subr.mxu0 0.0
      %431 = vmatpush1.msra.mxu0 0.0
      %432 = vmatprep.subr.mxu0 0.0
      %433 = vmatpush1.msra.mxu0 0.0
      %434 = vmatprep.subr.mxu0 0.0
      %435 = vmatpush1.msra.mxu0 0.0
      %436 = vmatprep.subr.mxu0 0.0
      %437 = vmatpush1.msra.mxu0 0.0
      %438 = vmatprep.subr.mxu0 0.0
      %439 = vmatpush1.msra.mxu0 0.0
      %440 = vmatprep.subr.mxu0 0.0
      %441 = vmatpush1.msra.mxu0 0.0
      %442 = vmatprep.mubr.f32.mxu0 0.0
      %443 = vmatmul.mubr.f32.gmra.mrb[0].mxu0 %v355
      %v444 = vpop.f32.mrb[0].mxu0
      %v445 = vadd.f32 %v351, %v444
      %v446 = vpop.f32.mrb[0].mxu0
      %447 = vmatprep.mubr.f32.mxu0 0.0
      %448 = vmatmul.mubr.f32.gmra.mrb[0].mxu0 %v358
      %v449 = vpop.f32.mrb[0].mxu0
      %v450 = vadd.f32 %v351, %v449
      %v451 = vpop.f32.mrb[0].mxu0
      %452 = vmatprep.mubr.f32.mxu0 0.0
      %453 = vmatmul.mubr.f32.gmra.mrb[0].mxu0 %v361
      %v454 = vpop.f32.mrb[0].mxu0
      %v455 = vadd.f32 %v351, %v454
      %v456 = vpop.f32.mrb[0].mxu0
      %457 = vmatprep.mubr.f32.mxu0 0.0
      %458 = vmatmul.mubr.f32.gmra.mrb[0].mxu0 %v364
      %v459 = vpop.f32.mrb[0].mxu0
      %v460 = vadd.f32 %v351, %v459
      %v461 = vpop.f32.mrb[0].mxu0
      %462 = vmatprep.mubr.f32.mxu0 0.0
      %463 = vmatmul.mubr.f32.gmra.mrb[0].mxu0 %v367
      %v464 = vpop.f32.mrb[0].mxu0
      %v465 = vadd.f32 %v351, %v464
      %v466 = vpop.f32.mrb[0].mxu0
      %467 = vmatprep.mubr.f32.mxu0 0.0
      %468 = vmatmul.mubr.f32.gmra.mrb[0].mxu0 %v370
      %v469 = vpop.f32.mrb[0].mxu0
      %v470 = vadd.f32 %v351, %v469
      %v471 = vpop.f32.mrb[0].mxu0
      %472 = vmatprep.mubr.f32.mxu0 0.0
      %473 = vmatmul.mubr.f32.gmra.mrb[0].mxu0 %v373
      %v474 = vpop.f32.mrb[0].mxu0
      %v475 = vadd.f32 %v351, %v474
      %v476 = vpop.f32.mrb[0].mxu0
      %477 = vmatprep.mubr.f32.mxu0 0.0
      %478 = vmatmul.mubr.f32.gmra.mrb[0].mxu0 %v376
      %v479 = vpop.f32.mrb[0].mxu0
      %v480 = vadd.f32 %v351, %v479
      %v481 = vpop.f32.mrb[0].mxu0
      %482 = vdwg.mxu0
      %491 = vrot.lane.b32.xlu0 %v445, 96
      %v492 = vpop.permute.xlu0 %491
      %493 = vrot.lane.b32.xlu0 %v450, 96
      %v494 = vpop.permute.xlu0 %493
      %495 = vrot.lane.b32.xlu0 %v455, 96
      %v496 = vpop.permute.xlu0 %495
      %497 = vrot.lane.b32.xlu0 %v460, 96
      %v498 = vpop.permute.xlu0 %497
      %499 = vrot.lane.b32.xlu0 %v465, 96
      %v500 = vpop.permute.xlu0 %499
      %501 = vrot.lane.b32.xlu0 %v470, 96
      %v502 = vpop.permute.xlu0 %501
      %503 = vrot.lane.b32.xlu0 %v475, 96
      %v504 = vpop.permute.xlu0 %503
      %505 = vrot.lane.b32.xlu0 %v480, 96
      %v506 = vpop.permute.xlu0 %505
      %v515 = vsub.f32 %v445, %v492
      %v516 = vsub.f32 %v450, %v494
      %v517 = vsub.f32 %v455, %v496
      %v518 = vsub.f32 %v460, %v498
      %v519 = vsub.f32 %v465, %v500
      %v520 = vsub.f32 %v470, %v502
      %v521 = vsub.f32 %v475, %v504
      %v522 = vsub.f32 %v480, %v506
      %v523 = vmax.f32 %v515, 0.0
      %v524 = vmax.f32 %v516, 0.0
      %v525 = vmax.f32 %v517, 0.0
      %v526 = vmax.f32 %v518, 0.0
      %v527 = vmax.f32 %v519, 0.0
      %v528 = vmax.f32 %v520, 0.0
      %v529 = vmax.f32 %v521, 0.0
      %v530 = vmax.f32 %v522, 0.0
      %v531 = vadd.f32 %v445, %v492
      %v532 = vadd.f32 %v450, %v494
      %v533 = vadd.f32 %v455, %v496
      %v534 = vadd.f32 %v460, %v498
      %v535 = vadd.f32 %v465, %v500
      %v536 = vadd.f32 %v470, %v502
      %v537 = vadd.f32 %v475, %v504
      %v538 = vadd.f32 %v480, %v506
      %v539 = vmax.f32 %v531, 0.0
      %v540 = vmax.f32 %v532, 0.0
      %v541 = vmax.f32 %v533, 0.0
      %v542 = vmax.f32 %v534, 0.0
      %v543 = vmax.f32 %v535, 0.0
      %v544 = vmax.f32 %v536, 0.0
      %v545 = vmax.f32 %v537, 0.0
      %v546 = vmax.f32 %v538, 0.0
      %v547 = vadd.f32 %v539, %v523
      %v548 = vadd.f32 %v540, %v524
      %v549 = vadd.f32 %v541, %v525
      %v550 = vadd.f32 %v542, %v526
      %v551 = vadd.f32 %v543, %v527
      %v552 = vadd.f32 %v544, %v528
      %v553 = vadd.f32 %v545, %v529
      %v554 = vadd.f32 %v546, %v530
      %v555 = vmul.f32 %v547, 0.5
      %v556 = vmul.f32 %v548, 0.5
      %v557 = vmul.f32 %v549, 0.5
      %v558 = vmul.f32 %v550, 0.5
      %v559 = vmul.f32 %v551, 0.5
      %v560 = vmul.f32 %v552, 0.5
      %v561 = vmul.f32 %v553, 0.5
      %v562 = vmul.f32 %v554, 0.5
      %v563 = vsub.f32 %v539, %v523
      %v564 = vsub.f32 %v540, %v524
      %v565 = vsub.f32 %v541, %v525
      %v566 = vsub.f32 %v542, %v526
      %v567 = vsub.f32 %v543, %v527
      %v568 = vsub.f32 %v544, %v528
      %v569 = vsub.f32 %v545, %v529
      %v570 = vsub.f32 %v546, %v530
      %v571 = vmul.f32 %v563, 0.5
      %v572 = vmul.f32 %v564, 0.5
      %v573 = vmul.f32 %v565, 0.5
      %v574 = vmul.f32 %v566, 0.5
      %v575 = vmul.f32 %v567, 0.5
      %v576 = vmul.f32 %v568, 0.5
      %v577 = vmul.f32 %v569, 0.5
      %v578 = vmul.f32 %v570, 0.5
      %v579 = vld [vmem:[%s3] sm:$0xf]
      %v580 = vld [vmem:[%s3 + $0x4] sm:$0xf]
      %v581 = vld [vmem:[%s3 + $0x8] sm:$0xf]
      %v582 = vld [vmem:[%s3 + $0xc] sm:$0xf]
      %v583 = vld [vmem:[%s3 + $0x10] sm:$0xf]
      %v584 = vld [vmem:[%s3 + $0x14] sm:$0xf]
      %v585 = vld [vmem:[%s3 + $0x18] sm:$0xf]
      %v586 = vld [vmem:[%s3 + $0x1c] sm:$0xf]
      %v587 = vunpack.c.l.bf16 %v579
      %v588 = vunpack.c.l.bf16 %v580
      %v589 = vunpack.c.l.bf16 %v581
      %v590 = vunpack.c.l.bf16 %v582
      %v591 = vunpack.c.l.bf16 %v583
      %v592 = vunpack.c.l.bf16 %v584
      %v593 = vunpack.c.l.bf16 %v585
      %v594 = vunpack.c.l.bf16 %v586
      %v595 = vld [vmem:[%s4] sm:$0x1]
      %vm596 = vcmask 261120
      %597 = vst.msk [vmem:[#allocation2] sm:$0xff] %vm596, %v555
      %598 = vst.msk [vmem:[#allocation2 + $0x8] sm:$0xff] %vm596, %v556
      %599 = vst.msk [vmem:[#allocation2 + $0x10] sm:$0xff] %vm596, %v557
      %600 = vst.msk [vmem:[#allocation2 + $0x18] sm:$0xff] %vm596, %v558
      %601 = vst.msk [vmem:[#allocation2 + $0x20] sm:$0xff] %vm596, %v559
      %602 = vst.msk [vmem:[#allocation2 + $0x28] sm:$0xff] %vm596, %v560
      %603 = vst.msk [vmem:[#allocation2 + $0x30] sm:$0xff] %vm596, %v561
      %604 = vst.msk [vmem:[#allocation2 + $0x38] sm:$0xff] %vm596, %v562
      %613 = vrot.lane.b32.xlu0 %v571, 32
      %v614 = vpop.permute.xlu0 %613
      %615 = vrot.lane.b32.xlu0 %v572, 32
      %v616 = vpop.permute.xlu0 %615
      %617 = vrot.lane.b32.xlu0 %v573, 32
      %v618 = vpop.permute.xlu0 %617
      %619 = vrot.lane.b32.xlu0 %v574, 32
      %v620 = vpop.permute.xlu0 %619
      %621 = vrot.lane.b32.xlu0 %v575, 32
      %v622 = vpop.permute.xlu0 %621
      %623 = vrot.lane.b32.xlu0 %v576, 32
      %v624 = vpop.permute.xlu0 %623
      %625 = vrot.lane.b32.xlu0 %v577, 32
      %v626 = vpop.permute.xlu0 %625
      %627 = vrot.lane.b32.xlu0 %v578, 32
      %v628 = vpop.permute.xlu0 %627
      %vm637 = vcmask 523520
      %638 = vst.msk [vmem:[#allocation2] sm:$0xff] %vm637, %v614
      %639 = vst.msk [vmem:[#allocation2 + $0x8] sm:$0xff] %vm637, %v616
      %640 = vst.msk [vmem:[#allocation2 + $0x10] sm:$0xff] %vm637, %v618
      %641 = vst.msk [vmem:[#allocation2 + $0x18] sm:$0xff] %vm637, %v620
      %642 = vst.msk [vmem:[#allocation2 + $0x20] sm:$0xff] %vm637, %v622
      %643 = vst.msk [vmem:[#allocation2 + $0x28] sm:$0xff] %vm637, %v624
      %644 = vst.msk [vmem:[#allocation2 + $0x30] sm:$0xff] %vm637, %v626
      %645 = vst.msk [vmem:[#allocation2 + $0x38] sm:$0xff] %vm637, %v628
      %v646 = vld [vmem:[#allocation2] sm:$0xff]
      %v647 = vld [vmem:[#allocation2 + $0x8] sm:$0xff]
      %v648 = vld [vmem:[#allocation2 + $0x10] sm:$0xff]
      %v649 = vld [vmem:[#allocation2 + $0x18] sm:$0xff]
      %v650 = vld [vmem:[#allocation2 + $0x20] sm:$0xff]
      %v651 = vld [vmem:[#allocation2 + $0x28] sm:$0xff]
      %v652 = vld [vmem:[#allocation2 + $0x30] sm:$0xff]
      %v653 = vld [vmem:[#allocation2 + $0x38] sm:$0xff]
      %v655 = vlaneseq
      %v656 = vshrl.u32 %v655, 7
      %v657 = vsub.s32 0, %v656
      %v658 = vrot.slane %v595, %v657
      %vm660 = vcmask 523264
      %v662 = vsel %vm660, %v646, 0
      %v665 = vsel %vm660, %v647, 0
      %v668 = vsel %vm660, %v648, 0
      %v671 = vsel %vm660, %v649, 0
      %v674 = vsel %vm660, %v650, 0
      %v677 = vsel %vm660, %v651, 0
      %v680 = vsel %vm660, %v652, 0
      %v683 = vsel %vm660, %v653, 0
      %685 = vmatprep.subr.mxu0 0.0
      %686 = vmatpush1.msra.mxu0 %v587
      %687 = vmatprep.subr.mxu0 0.0
      %688 = vmatpush1.msra.mxu0 %v588
      %689 = vmatprep.subr.mxu0 0.0
      %690 = vmatpush1.msra.mxu0 %v589
      %691 = vmatprep.subr.mxu0 0.0
      %692 = vmatpush1.msra.mxu0 %v590
      %693 = vmatprep.subr.mxu0 0.0
      %694 = vmatpush1.msra.mxu0 %v591
      %695 = vmatprep.subr.mxu0 0.0
      %696 = vmatpush1.msra.mxu0 %v592
      %697 = vmatprep.subr.mxu0 0.0
      %698 = vmatpush1.msra.mxu0 %v593
      %699 = vmatprep.subr.mxu0 0.0
      %700 = vmatpush1.msra.mxu0 %v594
      %701 = vmatprep.subr.mxu0 0.0
      %702 = vmatpush1.msra.mxu0 0.0
      %703 = vmatprep.subr.mxu0 0.0
      %704 = vmatpush1.msra.mxu0 0.0
      %705 = vmatprep.subr.mxu0 0.0
      %706 = vmatpush1.msra.mxu0 0.0
      %707 = vmatprep.subr.mxu0 0.0
      %708 = vmatpush1.msra.mxu0 0.0
      %709 = vmatprep.subr.mxu0 0.0
      %710 = vmatpush1.msra.mxu0 0.0
      %711 = vmatprep.subr.mxu0 0.0
      %712 = vmatpush1.msra.mxu0 0.0
      %713 = vmatprep.subr.mxu0 0.0
      %714 = vmatpush1.msra.mxu0 0.0
      %715 = vmatprep.subr.mxu0 0.0
      %716 = vmatpush1.msra.mxu0 0.0
      %717 = vmatprep.subr.mxu0 0.0
      %718 = vmatpush1.msra.mxu0 0.0
      %719 = vmatprep.subr.mxu0 0.0
      %720 = vmatpush1.msra.mxu0 0.0
      %721 = vmatprep.subr.mxu0 0.0
      %722 = vmatpush1.msra.mxu0 0.0
      %723 = vmatprep.subr.mxu0 0.0
      %724 = vmatpush1.msra.mxu0 0.0
      %725 = vmatprep.subr.mxu0 0.0
      %726 = vmatpush1.msra.mxu0 0.0
      %727 = vmatprep.subr.mxu0 0.0
      %728 = vmatpush1.msra.mxu0 0.0
      %729 = vmatprep.subr.mxu0 0.0
      %730 = vmatpush1.msra.mxu0 0.0
      %731 = vmatprep.subr.mxu0 0.0
      %732 = vmatpush1.msra.mxu0 0.0
      %733 = vmatprep.subr.mxu0 0.0
      %734 = vmatpush1.msra.mxu0 0.0
      %735 = vmatprep.subr.mxu0 0.0
      %736 = vmatpush1.msra.mxu0 0.0
      %737 = vmatprep.subr.mxu0 0.0
      %738 = vmatpush1.msra.mxu0 0.0
      %739 = vmatprep.subr.mxu0 0.0
      %740 = vmatpush1.msra.mxu0 0.0
      %741 = vmatprep.subr.mxu0 0.0
      %742 = vmatpush1.msra.mxu0 0.0
      %743 = vmatprep.subr.mxu0 0.0
      %744 = vmatpush1.msra.mxu0 0.0
      %745 = vmatprep.subr.mxu0 0.0
      %746 = vmatpush1.msra.mxu0 0.0
      %747 = vmatprep.subr.mxu0 0.0
      %748 = vmatpush1.msra.mxu0 0.0
      %749 = vmatprep.mubr.f32.mxu0 0.0
      %750 = vmatmul.mubr.f32.gmra.mrb[0].mxu0 %v662
      %v751 = vpop.f32.mrb[0].mxu0
      %v752 = vadd.f32 %v658, %v751
      %v753 = vpop.f32.mrb[0].mxu0
      %754 = vmatprep.mubr.f32.mxu0 0.0
      %755 = vmatmul.mubr.f32.gmra.mrb[0].mxu0 %v665
      %v756 = vpop.f32.mrb[0].mxu0
      %v757 = vadd.f32 %v658, %v756
      %v758 = vpop.f32.mrb[0].mxu0
      %759 = vmatprep.mubr.f32.mxu0 0.0
      %760 = vmatmul.mubr.f32.gmra.mrb[0].mxu0 %v668
      %v761 = vpop.f32.mrb[0].mxu0
      %v762 = vadd.f32 %v658, %v761
      %v763 = vpop.f32.mrb[0].mxu0
      %764 = vmatprep.mubr.f32.mxu0 0.0
      %765 = vmatmul.mubr.f32.gmra.mrb[0].mxu0 %v671
      %v766 = vpop.f32.mrb[0].mxu0
      %v767 = vadd.f32 %v658, %v766
      %v768 = vpop.f32.mrb[0].mxu0
      %769 = vmatprep.mubr.f32.mxu0 0.0
      %770 = vmatmul.mubr.f32.gmra.mrb[0].mxu0 %v674
      %v771 = vpop.f32.mrb[0].mxu0
      %v772 = vadd.f32 %v658, %v771
      %v773 = vpop.f32.mrb[0].mxu0
      %774 = vmatprep.mubr.f32.mxu0 0.0
      %775 = vmatmul.mubr.f32.gmra.mrb[0].mxu0 %v677
      %v776 = vpop.f32.mrb[0].mxu0
      %v777 = vadd.f32 %v658, %v776
      %v778 = vpop.f32.mrb[0].mxu0
      %779 = vmatprep.mubr.f32.mxu0 0.0
      %780 = vmatmul.mubr.f32.gmra.mrb[0].mxu0 %v680
      %v781 = vpop.f32.mrb[0].mxu0
      %v782 = vadd.f32 %v658, %v781
      %v783 = vpop.f32.mrb[0].mxu0
      %784 = vmatprep.mubr.f32.mxu0 0.0
      %785 = vmatmul.mubr.f32.gmra.mrb[0].mxu0 %v683
      %v786 = vpop.f32.mrb[0].mxu0
      %v787 = vadd.f32 %v658, %v786
      %v788 = vpop.f32.mrb[0].mxu0
      %789 = vdwg.mxu0
      %798 = vrot.lane.b32.xlu0 %v752, 96
      %v799 = vpop.permute.xlu0 %798
      %800 = vrot.lane.b32.xlu0 %v757, 96
      %v801 = vpop.permute.xlu0 %800
      %802 = vrot.lane.b32.xlu0 %v762, 96
      %v803 = vpop.permute.xlu0 %802
      %804 = vrot.lane.b32.xlu0 %v767, 96
      %v805 = vpop.permute.xlu0 %804
      %806 = vrot.lane.b32.xlu0 %v772, 96
      %v807 = vpop.permute.xlu0 %806
      %808 = vrot.lane.b32.xlu0 %v777, 96
      %v809 = vpop.permute.xlu0 %808
      %810 = vrot.lane.b32.xlu0 %v782, 96
      %v811 = vpop.permute.xlu0 %810
      %812 = vrot.lane.b32.xlu0 %v787, 96
      %v813 = vpop.permute.xlu0 %812
      %v822 = vsub.f32 %v752, %v799
      %v823 = vsub.f32 %v757, %v801
      %v824 = vsub.f32 %v762, %v803
      %v825 = vsub.f32 %v767, %v805
      %v826 = vsub.f32 %v772, %v807
      %v827 = vsub.f32 %v777, %v809
      %v828 = vsub.f32 %v782, %v811
      %v829 = vsub.f32 %v787, %v813
      %v830 = vmax.f32 %v822, 0.0
      %v831 = vmax.f32 %v823, 0.0
      %v832 = vmax.f32 %v824, 0.0
      %v833 = vmax.f32 %v825, 0.0
      %v834 = vmax.f32 %v826, 0.0
      %v835 = vmax.f32 %v827, 0.0
      %v836 = vmax.f32 %v828, 0.0
      %v837 = vmax.f32 %v829, 0.0
      %v838 = vadd.f32 %v752, %v799
      %v839 = vadd.f32 %v757, %v801
      %v840 = vadd.f32 %v762, %v803
      %v841 = vadd.f32 %v767, %v805
      %v842 = vadd.f32 %v772, %v807
      %v843 = vadd.f32 %v777, %v809
      %v844 = vadd.f32 %v782, %v811
      %v845 = vadd.f32 %v787, %v813
      %v846 = vmax.f32 %v838, 0.0
      %v847 = vmax.f32 %v839, 0.0
      %v848 = vmax.f32 %v840, 0.0
      %v849 = vmax.f32 %v841, 0.0
      %v850 = vmax.f32 %v842, 0.0
      %v851 = vmax.f32 %v843, 0.0
      %v852 = vmax.f32 %v844, 0.0
      %v853 = vmax.f32 %v845, 0.0
      %v854 = vadd.f32 %v846, %v830
      %v855 = vadd.f32 %v847, %v831
      %v856 = vadd.f32 %v848, %v832
      %v857 = vadd.f32 %v849, %v833
      %v858 = vadd.f32 %v850, %v834
      %v859 = vadd.f32 %v851, %v835
      %v860 = vadd.f32 %v852, %v836
      %v861 = vadd.f32 %v853, %v837
      %v862 = vmul.f32 %v854, 0.5
      %v863 = vmul.f32 %v855, 0.5
      %v864 = vmul.f32 %v856, 0.5
      %v865 = vmul.f32 %v857, 0.5
      %v866 = vmul.f32 %v858, 0.5
      %v867 = vmul.f32 %v859, 0.5
      %v868 = vmul.f32 %v860, 0.5
      %v869 = vmul.f32 %v861, 0.5
      %v870 = vsub.f32 %v846, %v830
      %v871 = vsub.f32 %v847, %v831
      %v872 = vsub.f32 %v848, %v832
      %v873 = vsub.f32 %v849, %v833
      %v874 = vsub.f32 %v850, %v834
      %v875 = vsub.f32 %v851, %v835
      %v876 = vsub.f32 %v852, %v836
      %v877 = vsub.f32 %v853, %v837
      %v878 = vmul.f32 %v870, 0.5
      %v879 = vmul.f32 %v871, 0.5
      %v880 = vmul.f32 %v872, 0.5
      %v881 = vmul.f32 %v873, 0.5
      %v882 = vmul.f32 %v874, 0.5
      %v883 = vmul.f32 %v875, 0.5
      %v884 = vmul.f32 %v876, 0.5
      %v885 = vmul.f32 %v877, 0.5
      %v886 = vld [vmem:[%s5] sm:$0xf]
      %v887 = vld [vmem:[%s5 + $0x4] sm:$0xf]
      %v888 = vld [vmem:[%s5 + $0x8] sm:$0xf]
      %v889 = vld [vmem:[%s5 + $0xc] sm:$0xf]
      %v890 = vld [vmem:[%s5 + $0x10] sm:$0xf]
      %v891 = vld [vmem:[%s5 + $0x14] sm:$0xf]
      %v892 = vld [vmem:[%s5 + $0x18] sm:$0xf]
      %v893 = vld [vmem:[%s5 + $0x1c] sm:$0xf]
      %v894 = vunpack.c.l.bf16 %v886
      %v895 = vunpack.c.l.bf16 %v887
      %v896 = vunpack.c.l.bf16 %v888
      %v897 = vunpack.c.l.bf16 %v889
      %v898 = vunpack.c.l.bf16 %v890
      %v899 = vunpack.c.l.bf16 %v891
      %v900 = vunpack.c.l.bf16 %v892
      %v901 = vunpack.c.l.bf16 %v893
      %v902 = vld [vmem:[%s6] sm:$0x1]
      %903 = vst.msk [vmem:[#allocation2] sm:$0xff] %vm596, %v862
      %904 = vst.msk [vmem:[#allocation2 + $0x8] sm:$0xff] %vm596, %v863
      %905 = vst.msk [vmem:[#allocation2 + $0x10] sm:$0xff] %vm596, %v864
      %906 = vst.msk [vmem:[#allocation2 + $0x18] sm:$0xff] %vm596, %v865
      %907 = vst.msk [vmem:[#allocation2 + $0x20] sm:$0xff] %vm596, %v866
      %908 = vst.msk [vmem:[#allocation2 + $0x28] sm:$0xff] %vm596, %v867
      %909 = vst.msk [vmem:[#allocation2 + $0x30] sm:$0xff] %vm596, %v868
      %910 = vst.msk [vmem:[#allocation2 + $0x38] sm:$0xff] %vm596, %v869
      %919 = vrot.lane.b32.xlu0 %v878, 32
      %v920 = vpop.permute.xlu0 %919
      %921 = vrot.lane.b32.xlu0 %v879, 32
      %v922 = vpop.permute.xlu0 %921
      %923 = vrot.lane.b32.xlu0 %v880, 32
      %v924 = vpop.permute.xlu0 %923
      %925 = vrot.lane.b32.xlu0 %v881, 32
      %v926 = vpop.permute.xlu0 %925
      %927 = vrot.lane.b32.xlu0 %v882, 32
      %v928 = vpop.permute.xlu0 %927
      %929 = vrot.lane.b32.xlu0 %v883, 32
      %v930 = vpop.permute.xlu0 %929
      %931 = vrot.lane.b32.xlu0 %v884, 32
      %v932 = vpop.permute.xlu0 %931
      %933 = vrot.lane.b32.xlu0 %v885, 32
      %v934 = vpop.permute.xlu0 %933
      %943 = vst.msk [vmem:[#allocation2] sm:$0xff] %vm637, %v920
      %944 = vst.msk [vmem:[#allocation2 + $0x8] sm:$0xff] %vm637, %v922
      %945 = vst.msk [vmem:[#allocation2 + $0x10] sm:$0xff] %vm637, %v924
      %946 = vst.msk [vmem:[#allocation2 + $0x18] sm:$0xff] %vm637, %v926
      %947 = vst.msk [vmem:[#allocation2 + $0x20] sm:$0xff] %vm637, %v928
      %948 = vst.msk [vmem:[#allocation2 + $0x28] sm:$0xff] %vm637, %v930
      %949 = vst.msk [vmem:[#allocation2 + $0x30] sm:$0xff] %vm637, %v932
      %950 = vst.msk [vmem:[#allocation2 + $0x38] sm:$0xff] %vm637, %v934
      %v951 = vld [vmem:[#allocation2] sm:$0xff]
      %v952 = vld [vmem:[#allocation2 + $0x8] sm:$0xff]
      %v953 = vld [vmem:[#allocation2 + $0x10] sm:$0xff]
      %v954 = vld [vmem:[#allocation2 + $0x18] sm:$0xff]
      %v955 = vld [vmem:[#allocation2 + $0x20] sm:$0xff]
      %v956 = vld [vmem:[#allocation2 + $0x28] sm:$0xff]
      %v957 = vld [vmem:[#allocation2 + $0x30] sm:$0xff]
      %v958 = vld [vmem:[#allocation2 + $0x38] sm:$0xff]
      %v960 = vlaneseq
      %v961 = vshrl.u32 %v960, 7
      %v962 = vsub.s32 0, %v961
      %v963 = vrot.slane %v902, %v962
      %v966 = vsel %vm660, %v951, 0
      %v969 = vsel %vm660, %v952, 0
      %v972 = vsel %vm660, %v953, 0
      %v975 = vsel %vm660, %v954, 0
      %v978 = vsel %vm660, %v955, 0
      %v981 = vsel %vm660, %v956, 0
      %v984 = vsel %vm660, %v957, 0
      %v987 = vsel %vm660, %v958, 0
      %989 = vmatprep.subr.mxu0 0.0
      %990 = vmatpush1.msra.mxu0 %v894
      %991 = vmatprep.subr.mxu0 0.0
      %992 = vmatpush1.msra.mxu0 %v895
      %993 = vmatprep.subr.mxu0 0.0
      %994 = vmatpush1.msra.mxu0 %v896
      %995 = vmatprep.subr.mxu0 0.0
      %996 = vmatpush1.msra.mxu0 %v897
      %997 = vmatprep.subr.mxu0 0.0
      %998 = vmatpush1.msra.mxu0 %v898
      %999 = vmatprep.subr.mxu0 0.0
      %1000 = vmatpush1.msra.mxu0 %v899
      %1001 = vmatprep.subr.mxu0 0.0
      %1002 = vmatpush1.msra.mxu0 %v900
      %1003 = vmatprep.subr.mxu0 0.0
      %1004 = vmatpush1.msra.mxu0 %v901
      %1005 = vmatprep.subr.mxu0 0.0
      %1006 = vmatpush1.msra.mxu0 0.0
      %1007 = vmatprep.subr.mxu0 0.0
      %1008 = vmatpush1.msra.mxu0 0.0
      %1009 = vmatprep.subr.mxu0 0.0
      %1010 = vmatpush1.msra.mxu0 0.0
      %1011 = vmatprep.subr.mxu0 0.0
      %1012 = vmatpush1.msra.mxu0 0.0
      %1013 = vmatprep.subr.mxu0 0.0
      %1014 = vmatpush1.msra.mxu0 0.0
      %1015 = vmatprep.subr.mxu0 0.0
      %1016 = vmatpush1.msra.mxu0 0.0
      %1017 = vmatprep.subr.mxu0 0.0
      %1018 = vmatpush1.msra.mxu0 0.0
      %1019 = vmatprep.subr.mxu0 0.0
      %1020 = vmatpush1.msra.mxu0 0.0
      %1021 = vmatprep.subr.mxu0 0.0
      %1022 = vmatpush1.msra.mxu0 0.0
      %1023 = vmatprep.subr.mxu0 0.0
      %1024 = vmatpush1.msra.mxu0 0.0
      %1025 = vmatprep.subr.mxu0 0.0
      %1026 = vmatpush1.msra.mxu0 0.0
      %1027 = vmatprep.subr.mxu0 0.0
      %1028 = vmatpush1.msra.mxu0 0.0
      %1029 = vmatprep.subr.mxu0 0.0
      %1030 = vmatpush1.msra.mxu0 0.0
      %1031 = vmatprep.subr.mxu0 0.0
      %1032 = vmatpush1.msra.mxu0 0.0
      %1033 = vmatprep.subr.mxu0 0.0
      %1034 = vmatpush1.msra.mxu0 0.0
      %1035 = vmatprep.subr.mxu0 0.0
      %1036 = vmatpush1.msra.mxu0 0.0
      %1037 = vmatprep.subr.mxu0 0.0
      %1038 = vmatpush1.msra.mxu0 0.0
      %1039 = vmatprep.subr.mxu0 0.0
      %1040 = vmatpush1.msra.mxu0 0.0
      %1041 = vmatprep.subr.mxu0 0.0
      %1042 = vmatpush1.msra.mxu0 0.0
      %1043 = vmatprep.subr.mxu0 0.0
      %1044 = vmatpush1.msra.mxu0 0.0
      %1045 = vmatprep.subr.mxu0 0.0
      %1046 = vmatpush1.msra.mxu0 0.0
      %1047 = vmatprep.subr.mxu0 0.0
      %1048 = vmatpush1.msra.mxu0 0.0
      %1049 = vmatprep.subr.mxu0 0.0
      %1050 = vmatpush1.msra.mxu0 0.0
      %1051 = vmatprep.subr.mxu0 0.0
      %1052 = vmatpush1.msra.mxu0 0.0
      %1053 = vmatprep.mubr.f32.mxu0 0.0
      %1054 = vmatmul.mubr.f32.gmra.mrb[0].mxu0 %v966
      %v1055 = vpop.f32.mrb[0].mxu0
      %v1056 = vadd.f32 %v963, %v1055
      %v1057 = vpop.f32.mrb[0].mxu0
      %1058 = vmatprep.mubr.f32.mxu0 0.0
      %1059 = vmatmul.mubr.f32.gmra.mrb[0].mxu0 %v969
      %v1060 = vpop.f32.mrb[0].mxu0
      %v1061 = vadd.f32 %v963, %v1060
      %v1062 = vpop.f32.mrb[0].mxu0
      %1063 = vmatprep.mubr.f32.mxu0 0.0
      %1064 = vmatmul.mubr.f32.gmra.mrb[0].mxu0 %v972
      %v1065 = vpop.f32.mrb[0].mxu0
      %v1066 = vadd.f32 %v963, %v1065
      %v1067 = vpop.f32.mrb[0].mxu0
      %1068 = vmatprep.mubr.f32.mxu0 0.0
      %1069 = vmatmul.mubr.f32.gmra.mrb[0].mxu0 %v975
      %v1070 = vpop.f32.mrb[0].mxu0
      %v1071 = vadd.f32 %v963, %v1070
      %v1072 = vpop.f32.mrb[0].mxu0
      %1073 = vmatprep.mubr.f32.mxu0 0.0
      %1074 = vmatmul.mubr.f32.gmra.mrb[0].mxu0 %v978
      %v1075 = vpop.f32.mrb[0].mxu0
      %v1076 = vadd.f32 %v963, %v1075
      %v1077 = vpop.f32.mrb[0].mxu0
      %1078 = vmatprep.mubr.f32.mxu0 0.0
      %1079 = vmatmul.mubr.f32.gmra.mrb[0].mxu0 %v981
      %v1080 = vpop.f32.mrb[0].mxu0
      %v1081 = vadd.f32 %v963, %v1080
      %v1082 = vpop.f32.mrb[0].mxu0
      %1083 = vmatprep.mubr.f32.mxu0 0.0
      %1084 = vmatmul.mubr.f32.gmra.mrb[0].mxu0 %v984
      %v1085 = vpop.f32.mrb[0].mxu0
      %v1086 = vadd.f32 %v963, %v1085
      %v1087 = vpop.f32.mrb[0].mxu0
      %1088 = vmatprep.mubr.f32.mxu0 0.0
      %1089 = vmatmul.mubr.f32.gmra.mrb[0].mxu0 %v987
      %v1090 = vpop.f32.mrb[0].mxu0
      %v1091 = vadd.f32 %v963, %v1090
      %v1092 = vpop.f32.mrb[0].mxu0
      %1093 = vdwg.mxu0
      %1102 = vrot.lane.b32.xlu0 %v1056, 96
      %v1103 = vpop.permute.xlu0 %1102
      %1104 = vrot.lane.b32.xlu0 %v1061, 96
      %v1105 = vpop.permute.xlu0 %1104
      %1106 = vrot.lane.b32.xlu0 %v1066, 96
      %v1107 = vpop.permute.xlu0 %1106
      %1108 = vrot.lane.b32.xlu0 %v1071, 96
      %v1109 = vpop.permute.xlu0 %1108
      %1110 = vrot.lane.b32.xlu0 %v1076, 96
      %v1111 = vpop.permute.xlu0 %1110
      %1112 = vrot.lane.b32.xlu0 %v1081, 96
      %v1113 = vpop.permute.xlu0 %1112
      %1114 = vrot.lane.b32.xlu0 %v1086, 96
      %v1115 = vpop.permute.xlu0 %1114
      %1116 = vrot.lane.b32.xlu0 %v1091, 96
      %v1117 = vpop.permute.xlu0 %1116
      %v1126 = vsub.f32 %v1056, %v1103
      %v1127 = vsub.f32 %v1061, %v1105
      %v1128 = vsub.f32 %v1066, %v1107
      %v1129 = vsub.f32 %v1071, %v1109
      %v1130 = vsub.f32 %v1076, %v1111
      %v1131 = vsub.f32 %v1081, %v1113
      %v1132 = vsub.f32 %v1086, %v1115
      %v1133 = vsub.f32 %v1091, %v1117
      %v1134 = vmax.f32 %v1126, 0.0
      %v1135 = vmax.f32 %v1127, 0.0
      %v1136 = vmax.f32 %v1128, 0.0
      %v1137 = vmax.f32 %v1129, 0.0
      %v1138 = vmax.f32 %v1130, 0.0
      %v1139 = vmax.f32 %v1131, 0.0
      %v1140 = vmax.f32 %v1132, 0.0
      %v1141 = vmax.f32 %v1133, 0.0
      %v1142 = vadd.f32 %v1056, %v1103
      %v1143 = vadd.f32 %v1061, %v1105
      %v1144 = vadd.f32 %v1066, %v1107
      %v1145 = vadd.f32 %v1071, %v1109
      %v1146 = vadd.f32 %v1076, %v1111
      %v1147 = vadd.f32 %v1081, %v1113
      %v1148 = vadd.f32 %v1086, %v1115
      %v1149 = vadd.f32 %v1091, %v1117
      %v1150 = vmax.f32 %v1142, 0.0
      %v1151 = vmax.f32 %v1143, 0.0
      %v1152 = vmax.f32 %v1144, 0.0
      %v1153 = vmax.f32 %v1145, 0.0
      %v1154 = vmax.f32 %v1146, 0.0
      %v1155 = vmax.f32 %v1147, 0.0
      %v1156 = vmax.f32 %v1148, 0.0
      %v1157 = vmax.f32 %v1149, 0.0
      %v1158 = vadd.f32 %v1150, %v1134
      %v1159 = vadd.f32 %v1151, %v1135
      %v1160 = vadd.f32 %v1152, %v1136
      %v1161 = vadd.f32 %v1153, %v1137
      %v1162 = vadd.f32 %v1154, %v1138
      %v1163 = vadd.f32 %v1155, %v1139
      %v1164 = vadd.f32 %v1156, %v1140
      %v1165 = vadd.f32 %v1157, %v1141
      %v1166 = vmul.f32 %v1158, 0.5
      %v1167 = vmul.f32 %v1159, 0.5
      %v1168 = vmul.f32 %v1160, 0.5
      %v1169 = vmul.f32 %v1161, 0.5
      %v1170 = vmul.f32 %v1162, 0.5
      %v1171 = vmul.f32 %v1163, 0.5
      %v1172 = vmul.f32 %v1164, 0.5
      %v1173 = vmul.f32 %v1165, 0.5
      %v1174 = vsub.f32 %v1150, %v1134
      %v1175 = vsub.f32 %v1151, %v1135
      %v1176 = vsub.f32 %v1152, %v1136
      %v1177 = vsub.f32 %v1153, %v1137
      %v1178 = vsub.f32 %v1154, %v1138
      %v1179 = vsub.f32 %v1155, %v1139
      %v1180 = vsub.f32 %v1156, %v1140
      %v1181 = vsub.f32 %v1157, %v1141
      %v1182 = vmul.f32 %v1174, 0.5
      %v1183 = vmul.f32 %v1175, 0.5
      %v1184 = vmul.f32 %v1176, 0.5
      %v1185 = vmul.f32 %v1177, 0.5
      %v1186 = vmul.f32 %v1178, 0.5
      %v1187 = vmul.f32 %v1179, 0.5
      %v1188 = vmul.f32 %v1180, 0.5
      %v1189 = vmul.f32 %v1181, 0.5
      %v1190 = vld [vmem:[%s7] sm:$0xf]
      %v1191 = vld [vmem:[%s7 + $0x4] sm:$0xf]
      %v1192 = vld [vmem:[%s7 + $0x8] sm:$0xf]
      %v1193 = vld [vmem:[%s7 + $0xc] sm:$0xf]
      %v1194 = vld [vmem:[%s7 + $0x10] sm:$0xf]
      %v1195 = vld [vmem:[%s7 + $0x14] sm:$0xf]
      %v1196 = vld [vmem:[%s7 + $0x18] sm:$0xf]
      %v1197 = vld [vmem:[%s7 + $0x1c] sm:$0xf]
      %v1198 = vunpack.c.l.bf16 %v1190
      %v1199 = vunpack.c.l.bf16 %v1191
      %v1200 = vunpack.c.l.bf16 %v1192
      %v1201 = vunpack.c.l.bf16 %v1193
      %v1202 = vunpack.c.l.bf16 %v1194
      %v1203 = vunpack.c.l.bf16 %v1195
      %v1204 = vunpack.c.l.bf16 %v1196
      %v1205 = vunpack.c.l.bf16 %v1197
      %v1206 = vld [vmem:[%s8] sm:$0x1]
      %1207 = vst.msk [vmem:[#allocation2] sm:$0xff] %vm596, %v1166
      %1208 = vst.msk [vmem:[#allocation2 + $0x8] sm:$0xff] %vm596, %v1167
      %1209 = vst.msk [vmem:[#allocation2 + $0x10] sm:$0xff] %vm596, %v1168
      %1210 = vst.msk [vmem:[#allocation2 + $0x18] sm:$0xff] %vm596, %v1169
      %1211 = vst.msk [vmem:[#allocation2 + $0x20] sm:$0xff] %vm596, %v1170
      %1212 = vst.msk [vmem:[#allocation2 + $0x28] sm:$0xff] %vm596, %v1171
      %1213 = vst.msk [vmem:[#allocation2 + $0x30] sm:$0xff] %vm596, %v1172
      %1214 = vst.msk [vmem:[#allocation2 + $0x38] sm:$0xff] %vm596, %v1173
      %1223 = vrot.lane.b32.xlu0 %v1182, 32
      %v1224 = vpop.permute.xlu0 %1223
      %1225 = vrot.lane.b32.xlu0 %v1183, 32
      %v1226 = vpop.permute.xlu0 %1225
      %1227 = vrot.lane.b32.xlu0 %v1184, 32
      %v1228 = vpop.permute.xlu0 %1227
      %1229 = vrot.lane.b32.xlu0 %v1185, 32
      %v1230 = vpop.permute.xlu0 %1229
      %1231 = vrot.lane.b32.xlu0 %v1186, 32
      %v1232 = vpop.permute.xlu0 %1231
      %1233 = vrot.lane.b32.xlu0 %v1187, 32
      %v1234 = vpop.permute.xlu0 %1233
      %1235 = vrot.lane.b32.xlu0 %v1188, 32
      %v1236 = vpop.permute.xlu0 %1235
      %1237 = vrot.lane.b32.xlu0 %v1189, 32
      %v1238 = vpop.permute.xlu0 %1237
      %1247 = vst.msk [vmem:[#allocation2] sm:$0xff] %vm637, %v1224
      %1248 = vst.msk [vmem:[#allocation2 + $0x8] sm:$0xff] %vm637, %v1226
      %1249 = vst.msk [vmem:[#allocation2 + $0x10] sm:$0xff] %vm637, %v1228
      %1250 = vst.msk [vmem:[#allocation2 + $0x18] sm:$0xff] %vm637, %v1230
      %1251 = vst.msk [vmem:[#allocation2 + $0x20] sm:$0xff] %vm637, %v1232
      %1252 = vst.msk [vmem:[#allocation2 + $0x28] sm:$0xff] %vm637, %v1234
      %1253 = vst.msk [vmem:[#allocation2 + $0x30] sm:$0xff] %vm637, %v1236
      %1254 = vst.msk [vmem:[#allocation2 + $0x38] sm:$0xff] %vm637, %v1238
      %v1255 = vld [vmem:[#allocation2] sm:$0xff]
      %v1256 = vld [vmem:[#allocation2 + $0x8] sm:$0xff]
      %v1257 = vld [vmem:[#allocation2 + $0x10] sm:$0xff]
      %v1258 = vld [vmem:[#allocation2 + $0x18] sm:$0xff]
      %v1259 = vld [vmem:[#allocation2 + $0x20] sm:$0xff]
      %v1260 = vld [vmem:[#allocation2 + $0x28] sm:$0xff]
      %v1261 = vld [vmem:[#allocation2 + $0x30] sm:$0xff]
      %v1262 = vld [vmem:[#allocation2 + $0x38] sm:$0xff]
      %v1264 = vlaneseq
      %v1265 = vshrl.u32 %v1264, 7
      %v1266 = vsub.s32 0, %v1265
      %v1267 = vrot.slane %v1206, %v1266
      %v1270 = vsel %vm660, %v1255, 0
      %v1273 = vsel %vm660, %v1256, 0
      %v1276 = vsel %vm660, %v1257, 0
      %v1279 = vsel %vm660, %v1258, 0
      %v1282 = vsel %vm660, %v1259, 0
      %v1285 = vsel %vm660, %v1260, 0
      %v1288 = vsel %vm660, %v1261, 0
      %v1291 = vsel %vm660, %v1262, 0
      %1293 = vmatprep.subr.mxu0 0.0
      %1294 = vmatpush1.msra.mxu0 %v1198
      %1295 = vmatprep.subr.mxu0 0.0
      %1296 = vmatpush1.msra.mxu0 %v1199
      %1297 = vmatprep.subr.mxu0 0.0
      %1298 = vmatpush1.msra.mxu0 %v1200
      %1299 = vmatprep.subr.mxu0 0.0
      %1300 = vmatpush1.msra.mxu0 %v1201
      %1301 = vmatprep.subr.mxu0 0.0
      %1302 = vmatpush1.msra.mxu0 %v1202
      %1303 = vmatprep.subr.mxu0 0.0
      %1304 = vmatpush1.msra.mxu0 %v1203
      %1305 = vmatprep.subr.mxu0 0.0
      %1306 = vmatpush1.msra.mxu0 %v1204
      %1307 = vmatprep.subr.mxu0 0.0
      %1308 = vmatpush1.msra.mxu0 %v1205
      %1309 = vmatprep.subr.mxu0 0.0
      %1310 = vmatpush1.msra.mxu0 0.0
      %1311 = vmatprep.subr.mxu0 0.0
      %1312 = vmatpush1.msra.mxu0 0.0
      %1313 = vmatprep.subr.mxu0 0.0
      %1314 = vmatpush1.msra.mxu0 0.0
      %1315 = vmatprep.subr.mxu0 0.0
      %1316 = vmatpush1.msra.mxu0 0.0
      %1317 = vmatprep.subr.mxu0 0.0
      %1318 = vmatpush1.msra.mxu0 0.0
      %1319 = vmatprep.subr.mxu0 0.0
      %1320 = vmatpush1.msra.mxu0 0.0
      %1321 = vmatprep.subr.mxu0 0.0
      %1322 = vmatpush1.msra.mxu0 0.0
      %1323 = vmatprep.subr.mxu0 0.0
      %1324 = vmatpush1.msra.mxu0 0.0
      %1325 = vmatprep.subr.mxu0 0.0
      %1326 = vmatpush1.msra.mxu0 0.0
      %1327 = vmatprep.subr.mxu0 0.0
      %1328 = vmatpush1.msra.mxu0 0.0
      %1329 = vmatprep.subr.mxu0 0.0
      %1330 = vmatpush1.msra.mxu0 0.0
      %1331 = vmatprep.subr.mxu0 0.0
      %1332 = vmatpush1.msra.mxu0 0.0
      %1333 = vmatprep.subr.mxu0 0.0
      %1334 = vmatpush1.msra.mxu0 0.0
      %1335 = vmatprep.subr.mxu0 0.0
      %1336 = vmatpush1.msra.mxu0 0.0
      %1337 = vmatprep.subr.mxu0 0.0
      %1338 = vmatpush1.msra.mxu0 0.0
      %1339 = vmatprep.subr.mxu0 0.0
      %1340 = vmatpush1.msra.mxu0 0.0
      %1341 = vmatprep.subr.mxu0 0.0
      %1342 = vmatpush1.msra.mxu0 0.0
      %1343 = vmatprep.subr.mxu0 0.0
      %1344 = vmatpush1.msra.mxu0 0.0
      %1345 = vmatprep.subr.mxu0 0.0
      %1346 = vmatpush1.msra.mxu0 0.0
      %1347 = vmatprep.subr.mxu0 0.0
      %1348 = vmatpush1.msra.mxu0 0.0
      %1349 = vmatprep.subr.mxu0 0.0
      %1350 = vmatpush1.msra.mxu0 0.0
      %1351 = vmatprep.subr.mxu0 0.0
      %1352 = vmatpush1.msra.mxu0 0.0
      %1353 = vmatprep.subr.mxu0 0.0
      %1354 = vmatpush1.msra.mxu0 0.0
      %1355 = vmatprep.subr.mxu0 0.0
      %1356 = vmatpush1.msra.mxu0 0.0
      %1357 = vmatprep.mubr.f32.mxu0 0.0
      %1358 = vmatmul.mubr.f32.gmra.mrb[0].mxu0 %v1270
      %v1359 = vpop.f32.mrb[0].mxu0
      %v1360 = vadd.f32 %v1267, %v1359
      %v1361 = vpop.f32.mrb[0].mxu0
      %1362 = vmatprep.mubr.f32.mxu0 0.0
      %1363 = vmatmul.mubr.f32.gmra.mrb[0].mxu0 %v1273
      %v1364 = vpop.f32.mrb[0].mxu0
      %v1365 = vadd.f32 %v1267, %v1364
      %v1366 = vpop.f32.mrb[0].mxu0
      %1367 = vmatprep.mubr.f32.mxu0 0.0
      %1368 = vmatmul.mubr.f32.gmra.mrb[0].mxu0 %v1276
      %v1369 = vpop.f32.mrb[0].mxu0
      %v1370 = vadd.f32 %v1267, %v1369
      %v1371 = vpop.f32.mrb[0].mxu0
      %1372 = vmatprep.mubr.f32.mxu0 0.0
      %1373 = vmatmul.mubr.f32.gmra.mrb[0].mxu0 %v1279
      %v1374 = vpop.f32.mrb[0].mxu0
      %v1375 = vadd.f32 %v1267, %v1374
      %v1376 = vpop.f32.mrb[0].mxu0
      %1377 = vmatprep.mubr.f32.mxu0 0.0
      %1378 = vmatmul.mubr.f32.gmra.mrb[0].mxu0 %v1282
      %v1379 = vpop.f32.mrb[0].mxu0
      %v1380 = vadd.f32 %v1267, %v1379
      %v1381 = vpop.f32.mrb[0].mxu0
      %1382 = vmatprep.mubr.f32.mxu0 0.0
      %1383 = vmatmul.mubr.f32.gmra.mrb[0].mxu0 %v1285
      %v1384 = vpop.f32.mrb[0].mxu0
      %v1385 = vadd.f32 %v1267, %v1384
      %v1386 = vpop.f32.mrb[0].mxu0
      %1387 = vmatprep.mubr.f32.mxu0 0.0
      %1388 = vmatmul.mubr.f32.gmra.mrb[0].mxu0 %v1288
      %v1389 = vpop.f32.mrb[0].mxu0
      %v1390 = vadd.f32 %v1267, %v1389
      %v1391 = vpop.f32.mrb[0].mxu0
      %1392 = vmatprep.mubr.f32.mxu0 0.0
      %1393 = vmatmul.mubr.f32.gmra.mrb[0].mxu0 %v1291
      %v1394 = vpop.f32.mrb[0].mxu0
      %v1395 = vadd.f32 %v1267, %v1394
      %v1396 = vpop.f32.mrb[0].mxu0
      %1397 = vdwg.mxu0
      %vm1398 = vcmask 31744
      %1399 = vst.msk [vmem:[%s334] sm:$0xff] %vm1398, %v1360
      %1400 = vst.msk [vmem:[%s334 + $0x8] sm:$0xff] %vm1398, %v1365
      %1401 = vst.msk [vmem:[%s334 + $0x10] sm:$0xff] %vm1398, %v1370
      %1402 = vst.msk [vmem:[%s334 + $0x18] sm:$0xff] %vm1398, %v1375
      %1403 = vst.msk [vmem:[%s334 + $0x20] sm:$0xff] %vm1398, %v1380
      %1404 = vst.msk [vmem:[%s334 + $0x28] sm:$0xff] %vm1398, %v1385
      %1405 = vst.msk [vmem:[%s334 + $0x30] sm:$0xff] %vm1398, %v1390
      %1406 = vst.msk [vmem:[%s334 + $0x38] sm:$0xff] %vm1398, %v1395
      %vm1407 = vcmask 64544
      %1408 = vst.msk [vmem:[%s334] sm:$0xff] %vm1407, %v1360
      %1409 = vst.msk [vmem:[%s334 + $0x8] sm:$0xff] %vm1407, %v1365
      %1410 = vst.msk [vmem:[%s334 + $0x10] sm:$0xff] %vm1407, %v1370
      %1411 = vst.msk [vmem:[%s334 + $0x18] sm:$0xff] %vm1407, %v1375
      %1412 = vst.msk [vmem:[%s334 + $0x20] sm:$0xff] %vm1407, %v1380
      %1413 = vst.msk [vmem:[%s334 + $0x28] sm:$0xff] %vm1407, %v1385
      %1414 = vst.msk [vmem:[%s334 + $0x30] sm:$0xff] %vm1407, %v1390
      %1415 = vst.msk [vmem:[%s334 + $0x38] sm:$0xff] %vm1407, %v1395
      %s1416 = smul.u32 8, %s20
      %p1417 = scmp.lt.s32.totalorder %s1416, 31
      %s1418 = scalar_select %p1417, %s1416, 31
      %s1419 = smul.addr %s1418, 8
      %s1420 = scalar_lea.vmem %s9, %s1419
      // Predicated region
      $region57: #{interval_mlp_forward.1} parent=55 // pred_check
        %p1421 = pneg %p232
      $region58: #{interval_mlp_forward.1} parent=55 // pred_check_branch
        %1423 = sbr.rel (%p1421) target = $region60
      $region59: #{interval_mlp_forward.1} parent=55 // pred_region
        %s1424 = smul.u32 8, %s20
      $region60: #{interval_mlp_forward.1} parent=55 // pred_fallthru
        _
    $region56: #{interval_mlp_forward.1} parent=5 // pred_fallthru
      _
    %p1425 = scmp.le.s32.totalorder 2, %s15
    // Predicated region
    $region61: #{interval_mlp_forward.1} parent=5 // pred_check
      %p1426 = pneg %p1425
    $region62: #{interval_mlp_forward.1} parent=5 // pred_check_branch
      %1428 = sbr.rel (%p1426) target = $region64
    $region63: #{interval_mlp_forward.1} parent=5 // pred_region
      %s1429 = ssub.s32 %s15, 2
      // Predicated region
      $region65: #{interval_mlp_forward.1} parent=63 // pred_check
        %p1430 = pneg %p238
      $region66: #{interval_mlp_forward.1} parent=63 // pred_check_branch
        %1432 = sbr.rel (%p1430) target = $region68
      $region67: #{interval_mlp_forward.1} parent=63 // pred_region
        %s1433 = smul.u32 8, %s21
        %p1434 = scmp.lt.s32.totalorder %s1433, 31
        %s1435 = scalar_select %p1434, %s1433, 31
        %s1436 = smul.addr %s1435, 8
        %s1437 = scalar_lea.vmem %s9, %s1436
      $region68: #{interval_mlp_forward.1} parent=63 // pred_fallthru
        _
    $region64: #{interval_mlp_forward.1} parent=5 // pred_fallthru
      _
  $region6: #{interval_mlp_forward.1} parent=0 // loop_footer
    %s19 = sadd.s32 1, %s15
  $region7: #{interval_mlp_forward.1} parent=0 // loop_footer_branch
    %14 = sbr.rel target = $region3
  $region8: #{interval_mlp_forward.1} parent=0 // loop_exit
    _

</llo_original>
